<compile_context>
chip_gen: v6e
topology: v6e:2x2x1
jax: 0.10.0
libtpu: 0.0.40
codegen_flags: <defaults>
</compile_context>

<pallas_src>
from functools import partial

import jax
import jax.numpy as jnp
from jax.experimental import pallas as pl
from jax.experimental.pallas import tpu as pltpu


def _attention_kernel(x_ref, wqkv_ref, wproj_ref, bproj_ref, o_ref, acc_ref,
                      *, heads_per_group, head_dim):
    """One grid step = one (batch block, head group).

    Shapes seen by the kernel:
      x_ref     : (Bb, N, C)            f32 activations
      wqkv_ref  : (n_g, C, 3*Wg)        bf16, [q|k|v] columns of group g,
                                         q columns pre-scaled by qk scale
      wproj_ref : (n_g, Wg, C)          bf16, proj rows of group g
      bproj_ref : (1, C)                f32 proj bias
      o_ref     : (Bb, N, C)            output block (resident across groups)
      acc_ref   : (Bb*N, C)             f32 scratch accumulator for the proj
    """
    Bb, N, C = x_ref.shape
    G = heads_per_group
    hd = head_dim
    Wg = G * hd
    M = Bb * N
    g = pl.program_id(1)

    # ---- fused-batch qkv projection for this head group (MXU, f32 acc) ----
    x = x_ref[...].reshape(M, C).astype(jnp.bfloat16)
    w = wqkv_ref[g]                                    # (C, 3*Wg) bf16
    qkv = jnp.dot(x, w, preferred_element_type=jnp.float32)   # (M, 3*Wg)

    # Cast to bf16 immediately at the GEMM output (halves live intermediates).
    q = qkv[:, 0 * Wg:1 * Wg].astype(jnp.bfloat16)     # already scaled
    k = qkv[:, 1 * Wg:2 * Wg].astype(jnp.bfloat16)
    v = qkv[:, 2 * Wg:3 * Wg].astype(jnp.bfloat16)

    # ---- per-head scaled-dot-product attention (within the group) ---------
    # Static lane slices per head, concatenated onto a leading (G*Bb) batch
    # axis so both contractions are plain leading-batch batched matmuls.
    def split_heads(t):                   # (M, Wg) -> (G*Bb, N, hd), bf16
        return jnp.concatenate(
            [t[:, i * hd:(i + 1) * hd].reshape(Bb, N, hd) for i in range(G)],
            axis=0)

    qh = split_heads(q)
    kh = split_heads(k)
    vh = split_heads(v)

    # scores[z, n, m] = sum_d qh[z, n, d] * kh[z, m, d]   (scale already folded)
    s = jnp.einsum('znd,zmd->znm', qh, kh,
                   preferred_element_type=jnp.float32)          # (G*Bb, N, N)
    s = s - jnp.max(s, axis=-1, keepdims=True)
    p = jnp.exp(s)                                              # unnormalized
    denom = jnp.sum(p, axis=-1, keepdims=True)                  # (G*Bb, N, 1)

    # PV matmul with unnormalized p; normalize afterwards on the much smaller
    # (z, N, hd) ctx tensor (one EUP reciprocal + one small VPU multiply).
    ctx = jnp.einsum('znm,zmd->znd', p.astype(jnp.bfloat16), vh,
                     preferred_element_type=jnp.float32)        # (G*Bb, N, hd)
    ctx = ctx * pl.reciprocal(denom, approx=True)

    # merge heads of this group back onto the lane axis: head i -> cols [i*hd,..)
    ctx = jnp.concatenate([ctx[i * Bb:(i + 1) * Bb] for i in range(G)],
                          axis=-1)                               # (Bb, N, Wg)
    ctx = ctx.reshape(M, Wg).astype(jnp.bfloat16)

    # ---- partial output projection for this head group --------------------
    partial_out = jnp.dot(ctx, wproj_ref[g],
                          preferred_element_type=jnp.float32)    # (M, C)

    @pl.when(g == 0)
    def _():
        acc_ref[...] = partial_out

    @pl.when(g > 0)
    def _():
        acc_ref[...] += partial_out

    @pl.when(g == pl.num_programs(1) - 1)
    def _():
        o_ref[...] = ((acc_ref[...] + bproj_ref[...])
                      .reshape(Bb, N, C).astype(o_ref.dtype))


def _pick_heads_per_group(num_heads, head_dim):
    """Smallest divisor of num_heads whose group width G*hd fills >=128 lanes
    (one full lane tile per group); falls back to all heads if C < 128."""
    if head_dim >= 128:
        return 1
    for g in range(1, num_heads + 1):
        if num_heads % g == 0 and g * head_dim >= 128:
            return g
    return num_heads


def _pick_batch_block(B, N, row_cap):
    """Largest divisor of B with flattened GEMM rows M = bblk*N <= row_cap,
    while keeping at least 2 grid steps on the batch axis (so v7x's two
    TensorCores both get work via the 'parallel' dimension)."""
    cap = max(1, B // 2)
    best = 1
    for cand in range(1, cap + 1):
        if B % cand == 0 and cand * N <= max(row_cap, N):
            best = cand
    return best


def _weight_spec(block_shape, index_map):
    """Grid-invariant weight block: single-buffer it (index_map is constant, so
    it is DMA'd once; double-buffering would only waste VMEM)."""
    try:
        return pl.BlockSpec(block_shape, index_map, pipeline_mode=pl.Buffered(1))
    except TypeError:  # older BlockSpec without pipeline_mode
        return pl.BlockSpec(block_shape, index_map)


def attention_forward(x, w_qkv, w_proj, b_proj, *, num_heads,
                      batch_block=None, heads_per_group=None):
    """x: (B, N, C) f32; w_qkv: (C, 3C); w_proj: (C, C); b_proj: (1, C)."""
    B, N, C = x.shape
    assert C % num_heads == 0
    hd = C // num_heads
    scale = hd ** (-0.5)

    if heads_per_group is None:
        heads_per_group = _pick_heads_per_group(num_heads, hd)
    assert num_heads % heads_per_group == 0
    G = heads_per_group
    Wg = G * hd
    n_g = num_heads // G

    # ---- generation-aware VMEM budget / tiling knobs ----------------------
    try:
        vmem_cap = pltpu.get_tpu_info().vmem_capacity_bytes
    except Exception:
        vmem_cap = 64 * 1024 * 1024          # conservative (v7x-sized) fallback
    row_cap = 1024 if vmem_cap >= 128 * 1024 * 1024 else 512
    vmem_limit = max(32 * 1024 * 1024,
                     min(int(0.75 * vmem_cap), 96 * 1024 * 1024))

    if batch_block is None:
        batch_block = _pick_batch_block(B, N, row_cap)
    assert B % batch_block == 0

    # ---- weight preprocessing (one-time, outside the kernel) --------------
    # Fold the qk scale into the q columns; regroup columns/rows so each head
    # group's q/k/v weights are contiguous; pre-cast to bf16 (halves weight
    # DMA bytes and resident VMEM, removes the per-step in-kernel cast).
    wq = w_qkv[:, 0 * C:1 * C] * scale
    wk = w_qkv[:, 1 * C:2 * C]
    wv = w_qkv[:, 2 * C:3 * C]

    def group_cols(w):                       # (C, C) -> (n_g, C, Wg)
        return w.reshape(C, n_g, Wg).transpose(1, 0, 2)

    w_qkv_g = jnp.concatenate(
        [group_cols(wq), group_cols(wk), group_cols(wv)],
        axis=-1).astype(jnp.bfloat16)        # (n_g, C, 3*Wg)
    w_proj_g = w_proj.reshape(n_g, Wg, C).astype(jnp.bfloat16)   # (n_g, Wg, C)
    b_proj_f32 = b_proj.reshape(1, C).astype(jnp.float32)

    kernel = partial(_attention_kernel, heads_per_group=G, head_dim=hd)

    return pl.pallas_call(
        kernel,
        out_shape=jax.ShapeDtypeStruct((B, N, C), x.dtype),
        grid_spec=pltpu.PrefetchScalarGridSpec(
            num_scalar_prefetch=0,
            grid=(B // batch_block, n_g),
            in_specs=[
                # activations: double-buffered (prefetch next batch block)
                pl.BlockSpec((batch_block, N, C), lambda b, g: (b, 0, 0)),
                # grid-invariant, bf16, single-buffered weights
                _weight_spec((n_g, C, 3 * Wg), lambda b, g: (0, 0, 0)),
                _weight_spec((n_g, Wg, C), lambda b, g: (0, 0, 0)),
                _weight_spec((1, C), lambda b, g: (0, 0)),
            ],
            out_specs=pl.BlockSpec((batch_block, N, C), lambda b, g: (b, 0, 0)),
            scratch_shapes=[pltpu.VMEM((batch_block * N, C), jnp.float32)],
        ),
        compiler_params=pltpu.CompilerParams(
            dimension_semantics=("parallel", "arbitrary"),
            vmem_limit_bytes=vmem_limit,
        ),
    )(x, w_qkv_g, w_proj_g, b_proj_f32)


def _reference(x, w_qkv, w_proj, b_proj, *, num_heads):
    """Pure-JAX f32 reference mirroring the PyTorch forward exactly."""
    B, N, C = x.shape
    hd = C // num_heads
    scale = hd ** (-0.5)
    qkv = x @ w_qkv                                       # (B, N, 3C)
    qkv = qkv.reshape(B, N, 3, num_heads, hd).transpose(2, 0, 3, 1, 4)
    q, k, v = qkv[0], qkv[1], qkv[2]                      # (B, H, N, hd)
    attn = (q @ k.transpose(0, 1, 3, 2)) * scale          # (B, H, N, N)
    attn = jax.nn.softmax(attn, axis=-1)
    out = (attn @ v).transpose(0, 2, 1, 3).reshape(B, N, C)
    return out @ w_proj + b_proj


if __name__ == "__main__":
    # Small shapes implied by the module: dim=C=128, num_heads=8 (head_dim=16)
    B, N, C = 2, 8, 128
    num_heads = 8

    key = jax.random.PRNGKey(0)
    kx, kqkv, kproj, kb = jax.random.split(key, 4)

    x = jax.random.normal(kx, (B, N, C), dtype=jnp.float32)

    # Deterministic synthetic parameters (qkv_bias=False -> no qkv bias).
    w_qkv = 0.02 * jax.random.normal(kqkv, (C, 3 * C), dtype=jnp.float32)
    w_proj = 0.02 * jax.random.normal(kproj, (C, C), dtype=jnp.float32)
    b_proj = 0.01 * jax.random.normal(kb, (1, C), dtype=jnp.float32)

    ref = _reference(x, w_qkv, w_proj, b_proj, num_heads=num_heads)

    # Default path: one 128-lane head group at these demo shapes.
    out = attention_forward(x, w_qkv, w_proj, b_proj, num_heads=num_heads)
    out = jax.block_until_ready(out)
    assert out.shape == (B, N, C)
    err = float(jnp.max(jnp.abs(out - ref)))
    # bf16 MXU inputs + approx softmax reciprocal -> looser tolerance than f32
    assert err < 2e-2, f"default grouping mismatch vs reference, max abs err {err}"

    # Multi-group path: exercises the head-group grid axis and the grouped
    # output-projection accumulation (the layout used at real MAE shapes).
    out2 = attention_forward(x, w_qkv, w_proj, b_proj, num_heads=num_heads,
                             heads_per_group=2)
    out2 = jax.block_until_ready(out2)
    err2 = float(jnp.max(jnp.abs(out2 - ref)))
    assert err2 < 2e-2, f"multi-group mismatch vs reference, max abs err {err2}"

    print("KERNEL_OK")
</pallas_src>

<mosaic_0001>
module attributes {stable_mosaic.version = 11 : i64} {
  func.func @_attention_kernel(%arg0: i32, %arg1: i32, %arg2: memref<1x8x128xf32, #tpu.memory_space<vmem>>, %arg3: memref<1x128x384xbf16, #tpu.memory_space<vmem>>, %arg4: memref<1x128x128xbf16, #tpu.memory_space<vmem>>, %arg5: memref<1x128xf32, #tpu.memory_space<vmem>>, %arg6: memref<1x8x128xf32, #tpu.memory_space<vmem>>, %arg7: memref<8x128xf32, #tpu.memory_space<vmem>>) attributes {dimension_semantics = [#tpu.dimension_semantics<parallel>, #tpu.dimension_semantics<arbitrary>], iteration_bounds = array<i64: 2, 1>, scalar_prefetch = 0 : i64, scratch_operands = 1 : i64, tpu.core_type = #tpu.core_type<tc>, window_params = [{transform_indices = @transform_0, window_bounds = array<i64: 1, 8, 128>}, {pipeline_mode = #tpu.pipeline_mode<synchronous>, transform_indices = @transform_1, window_bounds = array<i64: 1, 128, 384>}, {pipeline_mode = #tpu.pipeline_mode<synchronous>, transform_indices = @transform_2, window_bounds = array<i64: 1, 128, 128>}, {pipeline_mode = #tpu.pipeline_mode<synchronous>, transform_indices = @transform_3, window_bounds = array<i64: 1, 128>}, {transform_indices = @transform_4, window_bounds = array<i64: 1, 8, 128>}]} {
    %c0 = arith.constant 0 : index
    %c0_0 = arith.constant 0 : index
    %c0_1 = arith.constant 0 : index
    %0 = vector.load %arg2[%c0, %c0_0, %c0_1] : memref<1x8x128xf32, #tpu.memory_space<vmem>>, vector<1x8x128xf32>
    %1 = vector.shape_cast %0 : vector<1x8x128xf32> to vector<8x128xf32>
    %2 = arith.truncf %1 : vector<8x128xf32> to vector<8x128xbf16>
    %3 = arith.index_cast %arg1 : i32 to index
    %c0_2 = arith.constant 0 : index
    %c0_3 = arith.constant 0 : index
    %4 = vector.load %arg3[%3, %c0_2, %c0_3] : memref<1x128x384xbf16, #tpu.memory_space<vmem>>, vector<1x128x384xbf16>
    %5 = vector.shape_cast %4 : vector<1x128x384xbf16> to vector<128x384xbf16>
    %cst = arith.constant dense<0.000000e+00> : vector<8x384xf32>
    %6 = tpu.matmul %2, %5, %cst {dimension_numbers = #tpu.dot_dimension_numbers<[1], [0], [0], [1], [0, 0, 1, 1], [], []>} : vector<8x128xbf16>, vector<128x384xbf16>, vector<8x384xf32> -> vector<8x384xf32>
    %7 = vector.extract_strided_slice %6 {offsets = [0, 0], sizes = [8, 128], strides = [1, 1]} : vector<8x384xf32> to vector<8x128xf32>
    %8 = arith.truncf %7 : vector<8x128xf32> to vector<8x128xbf16>
    %9 = vector.extract_strided_slice %6 {offsets = [0, 128], sizes = [8, 128], strides = [1, 1]} : vector<8x384xf32> to vector<8x128xf32>
    %10 = arith.truncf %9 : vector<8x128xf32> to vector<8x128xbf16>
    %11 = vector.extract_strided_slice %6 {offsets = [0, 256], sizes = [8, 128], strides = [1, 1]} : vector<8x384xf32> to vector<8x128xf32>
    %12 = arith.truncf %11 : vector<8x128xf32> to vector<8x128xbf16>
    %13 = vector.extract_strided_slice %8 {offsets = [0, 0], sizes = [8, 16], strides = [1, 1]} : vector<8x128xbf16> to vector<8x16xbf16>
    %14 = vector.shape_cast %13 : vector<8x16xbf16> to vector<1x8x16xbf16>
    %15 = vector.extract_strided_slice %8 {offsets = [0, 16], sizes = [8, 16], strides = [1, 1]} : vector<8x128xbf16> to vector<8x16xbf16>
    %16 = vector.shape_cast %15 : vector<8x16xbf16> to vector<1x8x16xbf16>
    %17 = vector.extract_strided_slice %8 {offsets = [0, 32], sizes = [8, 16], strides = [1, 1]} : vector<8x128xbf16> to vector<8x16xbf16>
    %18 = vector.shape_cast %17 : vector<8x16xbf16> to vector<1x8x16xbf16>
    %19 = vector.extract_strided_slice %8 {offsets = [0, 48], sizes = [8, 16], strides = [1, 1]} : vector<8x128xbf16> to vector<8x16xbf16>
    %20 = vector.shape_cast %19 : vector<8x16xbf16> to vector<1x8x16xbf16>
    %21 = vector.extract_strided_slice %8 {offsets = [0, 64], sizes = [8, 16], strides = [1, 1]} : vector<8x128xbf16> to vector<8x16xbf16>
    %22 = vector.shape_cast %21 : vector<8x16xbf16> to vector<1x8x16xbf16>
    %23 = vector.extract_strided_slice %8 {offsets = [0, 80], sizes = [8, 16], strides = [1, 1]} : vector<8x128xbf16> to vector<8x16xbf16>
    %24 = vector.shape_cast %23 : vector<8x16xbf16> to vector<1x8x16xbf16>
    %25 = vector.extract_strided_slice %8 {offsets = [0, 96], sizes = [8, 16], strides = [1, 1]} : vector<8x128xbf16> to vector<8x16xbf16>
    %26 = vector.shape_cast %25 : vector<8x16xbf16> to vector<1x8x16xbf16>
    %27 = vector.extract_strided_slice %8 {offsets = [0, 112], sizes = [8, 16], strides = [1, 1]} : vector<8x128xbf16> to vector<8x16xbf16>
    %28 = vector.shape_cast %27 : vector<8x16xbf16> to vector<1x8x16xbf16>
    %29 = tpu.concatenate %14, %16, %18, %20, %22, %24, %26, %28 in 0 : vector<1x8x16xbf16>, vector<1x8x16xbf16>, vector<1x8x16xbf16>, vector<1x8x16xbf16>, vector<1x8x16xbf16>, vector<1x8x16xbf16>, vector<1x8x16xbf16>, vector<1x8x16xbf16> -> vector<8x8x16xbf16>
    %30 = vector.extract_strided_slice %10 {offsets = [0, 0], sizes = [8, 16], strides = [1, 1]} : vector<8x128xbf16> to vector<8x16xbf16>
    %31 = vector.shape_cast %30 : vector<8x16xbf16> to vector<1x8x16xbf16>
    %32 = vector.extract_strided_slice %10 {offsets = [0, 16], sizes = [8, 16], strides = [1, 1]} : vector<8x128xbf16> to vector<8x16xbf16>
    %33 = vector.shape_cast %32 : vector<8x16xbf16> to vector<1x8x16xbf16>
    %34 = vector.extract_strided_slice %10 {offsets = [0, 32], sizes = [8, 16], strides = [1, 1]} : vector<8x128xbf16> to vector<8x16xbf16>
    %35 = vector.shape_cast %34 : vector<8x16xbf16> to vector<1x8x16xbf16>
    %36 = vector.extract_strided_slice %10 {offsets = [0, 48], sizes = [8, 16], strides = [1, 1]} : vector<8x128xbf16> to vector<8x16xbf16>
    %37 = vector.shape_cast %36 : vector<8x16xbf16> to vector<1x8x16xbf16>
    %38 = vector.extract_strided_slice %10 {offsets = [0, 64], sizes = [8, 16], strides = [1, 1]} : vector<8x128xbf16> to vector<8x16xbf16>
    %39 = vector.shape_cast %38 : vector<8x16xbf16> to vector<1x8x16xbf16>
    %40 = vector.extract_strided_slice %10 {offsets = [0, 80], sizes = [8, 16], strides = [1, 1]} : vector<8x128xbf16> to vector<8x16xbf16>
    %41 = vector.shape_cast %40 : vector<8x16xbf16> to vector<1x8x16xbf16>
    %42 = vector.extract_strided_slice %10 {offsets = [0, 96], sizes = [8, 16], strides = [1, 1]} : vector<8x128xbf16> to vector<8x16xbf16>
    %43 = vector.shape_cast %42 : vector<8x16xbf16> to vector<1x8x16xbf16>
    %44 = vector.extract_strided_slice %10 {offsets = [0, 112], sizes = [8, 16], strides = [1, 1]} : vector<8x128xbf16> to vector<8x16xbf16>
    %45 = vector.shape_cast %44 : vector<8x16xbf16> to vector<1x8x16xbf16>
    %46 = tpu.concatenate %31, %33, %35, %37, %39, %41, %43, %45 in 0 : vector<1x8x16xbf16>, vector<1x8x16xbf16>, vector<1x8x16xbf16>, vector<1x8x16xbf16>, vector<1x8x16xbf16>, vector<1x8x16xbf16>, vector<1x8x16xbf16>, vector<1x8x16xbf16> -> vector<8x8x16xbf16>
    %47 = vector.extract_strided_slice %12 {offsets = [0, 0], sizes = [8, 16], strides = [1, 1]} : vector<8x128xbf16> to vector<8x16xbf16>
    %48 = vector.shape_cast %47 : vector<8x16xbf16> to vector<1x8x16xbf16>
    %49 = vector.extract_strided_slice %12 {offsets = [0, 16], sizes = [8, 16], strides = [1, 1]} : vector<8x128xbf16> to vector<8x16xbf16>
    %50 = vector.shape_cast %49 : vector<8x16xbf16> to vector<1x8x16xbf16>
    %51 = vector.extract_strided_slice %12 {offsets = [0, 32], sizes = [8, 16], strides = [1, 1]} : vector<8x128xbf16> to vector<8x16xbf16>
    %52 = vector.shape_cast %51 : vector<8x16xbf16> to vector<1x8x16xbf16>
    %53 = vector.extract_strided_slice %12 {offsets = [0, 48], sizes = [8, 16], strides = [1, 1]} : vector<8x128xbf16> to vector<8x16xbf16>
    %54 = vector.shape_cast %53 : vector<8x16xbf16> to vector<1x8x16xbf16>
    %55 = vector.extract_strided_slice %12 {offsets = [0, 64], sizes = [8, 16], strides = [1, 1]} : vector<8x128xbf16> to vector<8x16xbf16>
    %56 = vector.shape_cast %55 : vector<8x16xbf16> to vector<1x8x16xbf16>
    %57 = vector.extract_strided_slice %12 {offsets = [0, 80], sizes = [8, 16], strides = [1, 1]} : vector<8x128xbf16> to vector<8x16xbf16>
    %58 = vector.shape_cast %57 : vector<8x16xbf16> to vector<1x8x16xbf16>
    %59 = vector.extract_strided_slice %12 {offsets = [0, 96], sizes = [8, 16], strides = [1, 1]} : vector<8x128xbf16> to vector<8x16xbf16>
    %60 = vector.shape_cast %59 : vector<8x16xbf16> to vector<1x8x16xbf16>
    %61 = vector.extract_strided_slice %12 {offsets = [0, 112], sizes = [8, 16], strides = [1, 1]} : vector<8x128xbf16> to vector<8x16xbf16>
    %62 = vector.shape_cast %61 : vector<8x16xbf16> to vector<1x8x16xbf16>
    %63 = tpu.concatenate %48, %50, %52, %54, %56, %58, %60, %62 in 0 : vector<1x8x16xbf16>, vector<1x8x16xbf16>, vector<1x8x16xbf16>, vector<1x8x16xbf16>, vector<1x8x16xbf16>, vector<1x8x16xbf16>, vector<1x8x16xbf16>, vector<1x8x16xbf16> -> vector<8x8x16xbf16>
    "tpu.trace_start"() <{level = 10 : i32, message = "znd,zmd->znm"}> : () -> ()
    %cst_4 = arith.constant dense<0.000000e+00> : vector<8x8x8xf32>
    %64 = tpu.matmul %29, %46, %cst_4 {dimension_numbers = #tpu.dot_dimension_numbers<[2], [2], [1], [1], [0, 0, 0, 1, 1, 1], [0], [0]>} : vector<8x8x16xbf16>, vector<8x8x16xbf16>, vector<8x8x8xf32> -> vector<8x8x8xf32>
    "tpu.trace_stop"() : () -> ()
    %cst_5 = arith.constant dense<0xFF800000> : vector<8x8xf32>
    %65 = vector.multi_reduction <maximumf>, %64, %cst_5 [2] : vector<8x8x8xf32> to vector<8x8xf32>
    %66 = vector.shape_cast %65 : vector<8x8xf32> to vector<8x8x1xf32>
    %67 = vector.broadcast %66 : vector<8x8x1xf32> to vector<8x8x8xf32>
    %68 = arith.subf %64, %67 : vector<8x8x8xf32>
    %69 = math.exp %68 : vector<8x8x8xf32>
    %cst_6 = arith.constant dense<0.000000e+00> : vector<8x8xf32>
    %70 = vector.multi_reduction <add>, %69, %cst_6 [2] : vector<8x8x8xf32> to vector<8x8xf32>
    %71 = vector.shape_cast %70 : vector<8x8xf32> to vector<8x8x1xf32>
    %72 = arith.truncf %69 : vector<8x8x8xf32> to vector<8x8x8xbf16>
    "tpu.trace_start"() <{level = 10 : i32, message = "znm,zmd->znd"}> : () -> ()
    %cst_7 = arith.constant dense<0.000000e+00> : vector<8x8x16xf32>
    %73 = tpu.matmul %72, %63, %cst_7 {dimension_numbers = #tpu.dot_dimension_numbers<[2], [1], [1], [2], [0, 0, 0, 1, 1, 2], [0], [0]>} : vector<8x8x8xbf16>, vector<8x8x16xbf16>, vector<8x8x16xf32> -> vector<8x8x16xf32>
    "tpu.trace_stop"() : () -> ()
    %74 = tpu.reciprocal %71 {approx = true} : vector<8x8x1xf32> -> vector<8x8x1xf32>
    %75 = vector.broadcast %74 : vector<8x8x1xf32> to vector<8x8x16xf32>
    %76 = arith.mulf %73, %75 : vector<8x8x16xf32>
    %77 = vector.extract_strided_slice %76 {offsets = [0, 0, 0], sizes = [1, 8, 16], strides = [1, 1, 1]} : vector<8x8x16xf32> to vector<1x8x16xf32>
    %78 = vector.extract_strided_slice %76 {offsets = [1, 0, 0], sizes = [1, 8, 16], strides = [1, 1, 1]} : vector<8x8x16xf32> to vector<1x8x16xf32>
    %79 = vector.extract_strided_slice %76 {offsets = [2, 0, 0], sizes = [1, 8, 16], strides = [1, 1, 1]} : vector<8x8x16xf32> to vector<1x8x16xf32>
    %80 = vector.extract_strided_slice %76 {offsets = [3, 0, 0], sizes = [1, 8, 16], strides = [1, 1, 1]} : vector<8x8x16xf32> to vector<1x8x16xf32>
    %81 = vector.extract_strided_slice %76 {offsets = [4, 0, 0], sizes = [1, 8, 16], strides = [1, 1, 1]} : vector<8x8x16xf32> to vector<1x8x16xf32>
    %82 = vector.extract_strided_slice %76 {offsets = [5, 0, 0], sizes = [1, 8, 16], strides = [1, 1, 1]} : vector<8x8x16xf32> to vector<1x8x16xf32>
    %83 = vector.extract_strided_slice %76 {offsets = [6, 0, 0], sizes = [1, 8, 16], strides = [1, 1, 1]} : vector<8x8x16xf32> to vector<1x8x16xf32>
    %84 = vector.extract_strided_slice %76 {offsets = [7, 0, 0], sizes = [1, 8, 16], strides = [1, 1, 1]} : vector<8x8x16xf32> to vector<1x8x16xf32>
    %85 = tpu.concatenate %77, %78, %79, %80, %81, %82, %83, %84 in 2 : vector<1x8x16xf32>, vector<1x8x16xf32>, vector<1x8x16xf32>, vector<1x8x16xf32>, vector<1x8x16xf32>, vector<1x8x16xf32>, vector<1x8x16xf32>, vector<1x8x16xf32> -> vector<1x8x128xf32>
    %86 = vector.shape_cast %85 : vector<1x8x128xf32> to vector<8x128xf32>
    %87 = arith.truncf %86 : vector<8x128xf32> to vector<8x128xbf16>
    %88 = arith.index_cast %arg1 : i32 to index
    %c0_8 = arith.constant 0 : index
    %c0_9 = arith.constant 0 : index
    %89 = vector.load %arg4[%88, %c0_8, %c0_9] : memref<1x128x128xbf16, #tpu.memory_space<vmem>>, vector<1x128x128xbf16>
    %90 = vector.shape_cast %89 : vector<1x128x128xbf16> to vector<128x128xbf16>
    %cst_10 = arith.constant dense<0.000000e+00> : vector<8x128xf32>
    %91 = tpu.matmul %87, %90, %cst_10 {dimension_numbers = #tpu.dot_dimension_numbers<[1], [0], [0], [1], [0, 0, 1, 1], [], []>} : vector<8x128xbf16>, vector<128x128xbf16>, vector<8x128xf32> -> vector<8x128xf32>
    %c0_i32 = arith.constant 0 : i32
    %92 = arith.cmpi eq, %arg1, %c0_i32 : i32
    %93 = arith.extui %92 : i1 to i32
    %c0_i32_11 = arith.constant 0 : i32
    %94 = arith.cmpi ne, %93, %c0_i32_11 : i32
    scf.if %94 {
      %c0_16 = arith.constant 0 : index
      %c0_17 = arith.constant 0 : index
      %101 = vector.load %arg7[%c0_16, %c0_17] : memref<8x128xf32, #tpu.memory_space<vmem>>, vector<8x128xf32>
      tpu.vector_store %arg7[%c0_16, %c0_17], %91 {strides = array<i32>} : memref<8x128xf32, #tpu.memory_space<vmem>>, vector<8x128xf32>,
    } else {
    }
    %c0_i32_12 = arith.constant 0 : i32
    %95 = arith.cmpi sgt, %arg1, %c0_i32_12 : i32
    %96 = arith.extui %95 : i1 to i32
    %c0_i32_13 = arith.constant 0 : i32
    %97 = arith.cmpi ne, %96, %c0_i32_13 : i32
    scf.if %97 {
      %c0_16 = arith.constant 0 : index
      %c0_17 = arith.constant 0 : index
      %101 = vector.load %arg7[%c0_16, %c0_17] : memref<8x128xf32, #tpu.memory_space<vmem>>, vector<8x128xf32>
      %102 = arith.addf %101, %91 : vector<8x128xf32>
      %c0_18 = arith.constant 0 : index
      %c0_19 = arith.constant 0 : index
      %103 = vector.load %arg7[%c0_18, %c0_19] : memref<8x128xf32, #tpu.memory_space<vmem>>, vector<8x128xf32>
      tpu.vector_store %arg7[%c0_18, %c0_19], %102 {strides = array<i32>} : memref<8x128xf32, #tpu.memory_space<vmem>>, vector<8x128xf32>,
    } else {
    }
    %c0_i32_14 = arith.constant 0 : i32
    %98 = arith.cmpi eq, %arg1, %c0_i32_14 : i32
    %99 = arith.extui %98 : i1 to i32
    %c0_i32_15 = arith.constant 0 : i32
    %100 = arith.cmpi ne, %99, %c0_i32_15 : i32
    scf.if %100 {
      %c0_16 = arith.constant 0 : index
      %c0_17 = arith.constant 0 : index
      %101 = vector.load %arg7[%c0_16, %c0_17] : memref<8x128xf32, #tpu.memory_space<vmem>>, vector<8x128xf32>
      %c0_18 = arith.constant 0 : index
      %c0_19 = arith.constant 0 : index
      %102 = vector.load %arg5[%c0_18, %c0_19] : memref<1x128xf32, #tpu.memory_space<vmem>>, vector<1x128xf32>
      %103 = vector.broadcast %102 : vector<1x128xf32> to vector<8x128xf32>
      %104 = arith.addf %101, %103 : vector<8x128xf32>
      %105 = vector.shape_cast %104 : vector<8x128xf32> to vector<1x8x128xf32>
      %c0_20 = arith.constant 0 : index
      %c0_21 = arith.constant 0 : index
      %c0_22 = arith.constant 0 : index
      %106 = vector.load %arg6[%c0_20, %c0_21, %c0_22] : memref<1x8x128xf32, #tpu.memory_space<vmem>>, vector<1x8x128xf32>
      tpu.vector_store %arg6[%c0_20, %c0_21, %c0_22], %105 {strides = array<i32>} : memref<1x8x128xf32, #tpu.memory_space<vmem>>, vector<1x8x128xf32>,
    } else {
    }
    return
  }
  func.func @transform_0(%arg0: i32, %arg1: i32) -> (i32, i32, i32) {
    %c0_i32 = arith.constant 0 : i32
    %c0_i32_0 = arith.constant 0 : i32
    %c0_i32_1 = arith.constant 0 : i32
    return %arg0, %c0_i32, %c0_i32_0 : i32, i32, i32
  }
  func.func @transform_1(%arg0: i32, %arg1: i32) -> (i32, i32, i32) {
    %c0_i32 = arith.constant 0 : i32
    %c0_i32_0 = arith.constant 0 : i32
    %c0_i32_1 = arith.constant 0 : i32
    %c0_i32_2 = arith.constant 0 : i32
    return %c0_i32, %c0_i32_0, %c0_i32_1 : i32, i32, i32
  }
  func.func @transform_2(%arg0: i32, %arg1: i32) -> (i32, i32, i32) {
    %c0_i32 = arith.constant 0 : i32
    %c0_i32_0 = arith.constant 0 : i32
    %c0_i32_1 = arith.constant 0 : i32
    %c0_i32_2 = arith.constant 0 : i32
    return %c0_i32, %c0_i32_0, %c0_i32_1 : i32, i32, i32
  }
  func.func @transform_3(%arg0: i32, %arg1: i32) -> (i32, i32) {
    %c0_i32 = arith.constant 0 : i32
    %c0_i32_0 = arith.constant 0 : i32
    %c0_i32_1 = arith.constant 0 : i32
    return %c0_i32, %c0_i32_0 : i32, i32
  }
  func.func @transform_4(%arg0: i32, %arg1: i32) -> (i32, i32, i32) {
    %c0_i32 = arith.constant 0 : i32
    %c0_i32_0 = arith.constant 0 : i32
    %c0_i32_1 = arith.constant 0 : i32
    return %arg0, %c0_i32, %c0_i32_0 : i32, i32, i32
  }
}

</mosaic_0001>

<llo_original>
// kernel: tpu_custom_call.1
$region0: #{tpu_custom_call.1}
  #allocation0 [shape = 'u32[]', space=smem, size = 0x4, offset = 0x4, fixed_abs, tag = 'smem constant byte address 0x4 - core index']
  #allocation1 [shape = 'u32[144,128]{1,0:T(1,128)}', space=vmem, size = 0x12000, scoped, tag = 'internal scratch']
  #allocation2 [shape = 'f32[8,128]{1,0:T(8,128)}', space=vmem, size = 0x1000, scoped, tag = 'scratch operand']
  %s0 = inlined_call_operand.hbm [shape: f32[2,8,128], index: 0, kind: input, shape index: {}]
  %s1 = inlined_call_operand.hbm [shape: bf16[1,128,384], index: 1, kind: input, shape index: {}]
  %s2 = inlined_call_operand.hbm [shape: bf16[1,128,128], index: 2, kind: input, shape index: {}]
  %s3 = inlined_call_operand.vmem [shape: f32[1,128], index: 3, kind: input, shape index: {}]
  %s4 = inlined_call_operand.hbm [shape: f32[2,8,128], index: 4, kind: output, shape index: {}]
  %s5 = sld [smem:[#allocation0]]
  $region73: #{tpu_custom_call.1} parent=0
    _
  %s7 = ssub.s32 1, %s5
  %s8 = scalar_select 0, %s7, %s5
  $region1: #{tpu_custom_call.1} parent=0
    #allocation3 [shape = 'u8[8192]{0}', space=vmem, size = 0x2000, scoped, tag = 'input window, operand 0']
    #allocation4 [shape = 's32[2]{0}', space=sflag, size = 0x8, scoped, tag = 'scoped memory for tpu_custom_call.1']
    #allocation5 [shape = 's32[2]{0}', space=sflag, size = 0x8, scoped, tag = 'scoped memory for tpu_custom_call.1']
    #allocation6 [shape = 'u8[98304]{0}', space=vmem, size = 0x18000, scoped, tag = 'input window, operand 1, single buffered']
    #allocation7 [shape = 's32[1]{0}', space=sflag, size = 0x4, scoped, tag = 'scoped memory for tpu_custom_call.1']
    #allocation8 [shape = 'u8[32768]{0}', space=vmem, size = 0x8000, scoped, tag = 'input window, operand 2, single buffered']
    #allocation9 [shape = 'u8[8192]{0}', space=vmem, size = 0x2000, scoped, tag = 'output window, operand 0']
    %9 = vsyncpa [#allocation4], 0
    %s10 = scalar_lea.sflag [#allocation4], 1
    %11 = vsyncpa %s10, 0
    %12 = vsyncpa [#allocation7], 0
    %13 = vsyncpa [#allocation5], 0
    %s14 = scalar_lea.sflag [#allocation5], 1
    %15 = vsyncpa %s14, 0
    loop: start=0, step=1, limit=4
    $region2: #{tpu_custom_call.1} parent=1 // loop_pre_header
      _
    $region3: #{tpu_custom_call.1} parent=1 // loop_header
      %s17 = sphi 0, %s21
      %p18 = scmp.ge.s32.totalorder %s17, 4
      %s24 = sphi 0, %s36
      %s25 = sphi 0, %s32
      %s26 = sphi 0, %s24
      %s27 = sphi 0, %s25
      %s28 = sphi 0, %s26
      %s29 = sphi 0, %s27
      %s39 = sphi 0, %s41
      %s42 = sphi 0, %s39
      %s43 = sphi 0, %s42
      %s59 = sphi 0, %s43
      %s63 = sphi 0, %s63
      %s65 = sphi 0, %s63
      %s66 = sphi 0, %s65
      %s80 = sphi 0, %s66
      %s84 = sphi 0, %s84
      %s86 = sphi 0, %s84
      %s87 = sphi 0, %s86
      %s101 = sphi 0, %s87
      %s105 = sphi 0, %s105
      %s107 = sphi 0, %s105
      %s108 = sphi 0, %s107
      %s122 = sphi 0, %s108
      %s128 = sphi 0, %s130
      %s131 = sphi 0, %s128
      %s132 = sphi 0, %s131
      %s148 = sphi 0, %s132
    $region4: #{tpu_custom_call.1} parent=1 // loop_header_branch
      %20 = sbr.rel (%p18) target = $region8
    $region5: #{tpu_custom_call.1} parent=1 // loop_body
      %s22 = ssub.s32 %s17, 1
      %s23 = ssub.s32 %s17, 2
      %s30 = sadd.s32 1, %s25
      %p31 = scmp.ge.s32.totalorder %s30, 1
      %s32 = scalar_select %p31, 0, %s30
      %s33 = sadd.s32 1, %s24
      %s34 = scalar_select %p31, %s33, %s24
      %p35 = scmp.ge.s32.totalorder %s34, 2
      %s36 = scalar_select %p35, 0, %s34
      %s37 = ssub.s32 %s24, %s36
      %p38 = scmp.eq.s32.totalorder %s37, 0
      %s40 = sadd.s32 %s39, 1
      %s41 = scalar_select %p38, %s39, %s40
      %p44 = pneg %p38
      %p45 = scmp.eq.s32.totalorder %s17, 1
      %p46 = por %p44, %p45
      %p47 = scmp.ne.s32.totalorder %s39, %s42
      %p48 = scmp.eq.s32.totalorder %s17, 0
      %p49 = por %p47, %p48
      %p50 = scmp.ne.s32.totalorder %s39, %s42
      %p51 = scmp.eq.s32.totalorder %s22, 1
      %p52 = por %p50, %p51
      %p53 = scmp.ne.s32.totalorder %s42, %s43
      %p54 = scmp.eq.s32.totalorder %s22, 0
      %p55 = por %p53, %p54
      %p56 = scmp.ne.s32.totalorder %s42, %s43
      %p57 = scmp.eq.s32.totalorder %s23, 1
      %p58 = por %p56, %p57
      %p60 = scmp.ne.s32.totalorder %s43, %s59
      %p61 = scmp.eq.s32.totalorder %s23, 0
      %p62 = por %p60, %p61
      %s64 = sadd.s32 %s63, 1
      %p67 = scmp.eq.s32.totalorder %s17, 1
      %p68 = scmp.ne.s32.totalorder %s63, %s65
      %p69 = scmp.eq.s32.totalorder %s17, 0
      %p70 = por %p68, %p69
      %p71 = scmp.ne.s32.totalorder %s63, %s65
      %p72 = scmp.eq.s32.totalorder %s22, 1
      %p73 = por %p71, %p72
      %p74 = scmp.ne.s32.totalorder %s65, %s66
      %p75 = scmp.eq.s32.totalorder %s22, 0
      %p76 = por %p74, %p75
      %p77 = scmp.ne.s32.totalorder %s65, %s66
      %p78 = scmp.eq.s32.totalorder %s23, 1
      %p79 = por %p77, %p78
      %p81 = scmp.ne.s32.totalorder %s66, %s80
      %p82 = scmp.eq.s32.totalorder %s23, 0
      %p83 = por %p81, %p82
      %s85 = sadd.s32 %s84, 1
      %p88 = scmp.eq.s32.totalorder %s17, 1
      %p89 = scmp.ne.s32.totalorder %s84, %s86
      %p90 = scmp.eq.s32.totalorder %s17, 0
      %p91 = por %p89, %p90
      %p92 = scmp.ne.s32.totalorder %s84, %s86
      %p93 = scmp.eq.s32.totalorder %s22, 1
      %p94 = por %p92, %p93
      %p95 = scmp.ne.s32.totalorder %s86, %s87
      %p96 = scmp.eq.s32.totalorder %s22, 0
      %p97 = por %p95, %p96
      %p98 = scmp.ne.s32.totalorder %s86, %s87
      %p99 = scmp.eq.s32.totalorder %s23, 1
      %p100 = por %p98, %p99
      %p102 = scmp.ne.s32.totalorder %s87, %s101
      %p103 = scmp.eq.s32.totalorder %s23, 0
      %p104 = por %p102, %p103
      %s106 = sadd.s32 %s105, 1
      %p109 = scmp.eq.s32.totalorder %s17, 1
      %p110 = scmp.ne.s32.totalorder %s105, %s107
      %p111 = scmp.eq.s32.totalorder %s17, 0
      %p112 = por %p110, %p111
      %p113 = scmp.ne.s32.totalorder %s105, %s107
      %p114 = scmp.eq.s32.totalorder %s22, 1
      %p115 = por %p113, %p114
      %p116 = scmp.ne.s32.totalorder %s107, %s108
      %p117 = scmp.eq.s32.totalorder %s22, 0
      %p118 = por %p116, %p117
      %p119 = scmp.ne.s32.totalorder %s107, %s108
      %p120 = scmp.eq.s32.totalorder %s23, 1
      %p121 = por %p119, %p120
      %p123 = scmp.ne.s32.totalorder %s108, %s122
      %p124 = scmp.eq.s32.totalorder %s23, 0
      %p125 = por %p123, %p124
      %s126 = ssub.s32 %s24, %s36
      %p127 = scmp.eq.s32.totalorder %s126, 0
      %s129 = sadd.s32 %s128, 1
      %s130 = scalar_select %p127, %s128, %s129
      %p133 = pneg %p127
      %p134 = scmp.eq.s32.totalorder %s17, 1
      %p135 = por %p133, %p134
      %p136 = scmp.ne.s32.totalorder %s128, %s131
      %p137 = scmp.eq.s32.totalorder %s17, 0
      %p138 = por %p136, %p137
      %p139 = scmp.ne.s32.totalorder %s128, %s131
      %p140 = scmp.eq.s32.totalorder %s22, 1
      %p141 = por %p139, %p140
      %p142 = scmp.ne.s32.totalorder %s131, %s132
      %p143 = scmp.eq.s32.totalorder %s22, 0
      %p144 = por %p142, %p143
      %p145 = scmp.ne.s32.totalorder %s131, %s132
      %p146 = scmp.eq.s32.totalorder %s23, 1
      %p147 = por %p145, %p146
      %p149 = scmp.ne.s32.totalorder %s132, %s148
      %p150 = scmp.eq.s32.totalorder %s23, 0
      %p151 = por %p149, %p150
      %p152 = scmp.le.s32.totalorder 1, %s17
      %p153 = scmp.lt.s32.totalorder %s17, 3
      %p154 = pnand %p152, %p153
      %p155 = pneg %p154
      // Predicated region
      $region9: #{tpu_custom_call.1} parent=5 // pred_check
        _
      $region10: #{tpu_custom_call.1} parent=5 // pred_check_branch
        %157 = sbr.rel (%p154) target = $region12
      $region11: #{tpu_custom_call.1} parent=5 // pred_region
        %s158 = ssub.s32 %s17, 1
        // Predicated region
        $region13: #{tpu_custom_call.1} parent=11 // pred_check
          %p159 = pneg %p76
        $region14: #{tpu_custom_call.1} parent=11 // pred_check_branch
          %161 = sbr.rel (%p159) target = $region16
        $region15: #{tpu_custom_call.1} parent=11 // pred_region
          %s163 = ssub.s32 3072, 3072
          %164 = vsyncadd [#allocation7], %s163
          %s165 = sshll.u32 [#allocation6], 4
          %s166 = int_to_ptr.vmem [resolvable:$true] %s165
          %171 = dma.hbm_to_vmem [thread:$0]  %s1, 3072, %s166, [#allocation7], 192, 192, 12
        $region16: #{tpu_custom_call.1} parent=11 // pred_fallthru
          _
        // Predicated region
        $region17: #{tpu_custom_call.1} parent=11 // pred_check
          %p172 = pneg %p97
        $region18: #{tpu_custom_call.1} parent=11 // pred_check_branch
          %174 = sbr.rel (%p172) target = $region20
        $region19: #{tpu_custom_call.1} parent=11 // pred_region
          %s176 = ssub.s32 1024, 1024
          %177 = vsyncadd [#allocation7], %s176
          %s178 = sshll.u32 [#allocation8], 4
          %s179 = int_to_ptr.vmem [resolvable:$true] %s178
          %184 = dma.hbm_to_vmem [thread:$0]  %s2, 1024, %s179, [#allocation7], 64, 64, 4
        $region20: #{tpu_custom_call.1} parent=11 // pred_fallthru
          _
        // Predicated region
        $region21: #{tpu_custom_call.1} parent=11 // pred_check
          %p185 = pneg %p118
        $region22: #{tpu_custom_call.1} parent=11 // pred_check_branch
          %187 = sbr.rel (%p185) target = $region24
        $region23: #{tpu_custom_call.1} parent=11 // pred_region
          _
        $region24: #{tpu_custom_call.1} parent=11 // pred_fallthru
          _
      $region12: #{tpu_custom_call.1} parent=5 // pred_fallthru
        _
      %p188 = scmp.lt.s32.totalorder %s17, 2
      // Predicated region
      $region25: #{tpu_custom_call.1} parent=5 // pred_check
        %p189 = pneg %p188
      $region26: #{tpu_custom_call.1} parent=5 // pred_check_branch
        %191 = sbr.rel (%p189) target = $region28
      $region27: #{tpu_custom_call.1} parent=5 // pred_region
        // Predicated region
        $region29: #{tpu_custom_call.1} parent=27 // pred_check
          %p192 = pneg %p49
        $region30: #{tpu_custom_call.1} parent=27 // pred_check_branch
          %194 = sbr.rel (%p192) target = $region32
        $region31: #{tpu_custom_call.1} parent=27 // pred_region
          %s195 = sand.u32 %s39, 1
          %s196 = scalar_lea.sflag [#allocation4], %s195
          %s197 = sand.u32 %s39, 1
          %s198 = smul.addr %s197, 8
          %s199 = scalar_lea.vmem [#allocation3], %s198
          %s201 = ssub.s32 128, 128
          %202 = vsyncadd %s196, %s201
          %s203 = smul.addr %s24, 128
          %s204 = scalar_lea.hbm %s0, %s203
          %s206 = sshll.u32 %s199, 4
          %s207 = int_to_ptr.vmem [resolvable:$true] %s206
          %209 = dma.hbm_to_vmem [thread:$0]  %s204, 128, %s207, %s196
        $region32: #{tpu_custom_call.1} parent=27 // pred_fallthru
          _
      $region28: #{tpu_custom_call.1} parent=5 // pred_fallthru
        _
      %p210 = scmp.le.s32.totalorder 1, %s17
      %p211 = scmp.lt.s32.totalorder %s17, 3
      %p212 = pnand %p210, %p211
      %p213 = pneg %p212
      // Predicated region
      $region33: #{tpu_custom_call.1} parent=5 // pred_check
        _
      $region34: #{tpu_custom_call.1} parent=5 // pred_check_branch
        %215 = sbr.rel (%p212) target = $region36
      $region35: #{tpu_custom_call.1} parent=5 // pred_region
        %s216 = ssub.s32 %s17, 1
        %s217 = sand.u32 %s42, 1
        %s218 = scalar_lea.sflag [#allocation4], %s217
        %s219 = sand.u32 %s42, 1
        %s220 = smul.addr %s219, 8
        %s221 = scalar_lea.vmem [#allocation3], %s220
        // Predicated region
        $region37: #{tpu_custom_call.1} parent=35 // pred_check
          %p222 = pneg %p55
        $region38: #{tpu_custom_call.1} parent=35 // pred_check_branch
          %224 = sbr.rel (%p222) target = $region40
        $region39: #{tpu_custom_call.1} parent=35 // pred_region
          %225 = dma.done %s218, 128
        $region40: #{tpu_custom_call.1} parent=35 // pred_fallthru
          _
        // Predicated region
        $region41: #{tpu_custom_call.1} parent=35 // pred_check
          %p226 = pneg %p76
        $region42: #{tpu_custom_call.1} parent=35 // pred_check_branch
          %228 = sbr.rel (%p226) target = $region44
        $region43: #{tpu_custom_call.1} parent=35 // pred_region
          %229 = dma.done [#allocation7], 3072
        $region44: #{tpu_custom_call.1} parent=35 // pred_fallthru
          _
        // Predicated region
        $region45: #{tpu_custom_call.1} parent=35 // pred_check
          %p230 = pneg %p97
        $region46: #{tpu_custom_call.1} parent=35 // pred_check_branch
          %232 = sbr.rel (%p230) target = $region48
        $region47: #{tpu_custom_call.1} parent=35 // pred_region
          %233 = dma.done [#allocation7], 1024
        $region48: #{tpu_custom_call.1} parent=35 // pred_fallthru
          _
        %s234 = sand.u32 %s42, 1
        %s235 = scalar_lea.sflag [#allocation4], %s234
        %s236 = sand.u32 %s42, 1
        %s237 = smul.addr %s236, 8
        %s238 = scalar_lea.vmem [#allocation3], %s237
        %p239 = pneg %p55
        %p240 = pneg %p52
        %p241 = pneg %p76
        %p242 = pneg %p73
        %p243 = pneg %p97
        %p244 = pneg %p94
        %p245 = pneg %p118
        %p246 = pneg %p115
        %p247 = pneg %p144
        %p248 = pneg %p141
        %s249 = sand.u32 %s131, 1
        %s250 = scalar_lea.sflag [#allocation5], %s249
        %s251 = sand.u32 %s131, 1
        %s252 = smul.addr %s251, 8
        %s253 = scalar_lea.vmem [#allocation9], %s252
        %v255 = vld [vmem:[%s221] sm:$0xff]
        %v256 = vpack.c.bf16 %v255, %v255
        %s257 = smul.u32 %s27, 48
        %s258 = smul.addr %s257, 4
        %s259 = scalar_lea.vmem [#allocation6], %s258
        %v260 = vld [vmem:[%s259] sm:$0xff]
        %v261 = vld [vmem:[%s259 + $0x8] sm:$0xf]
        %v262 = vld [vmem:[%s259 + $0xc] sm:$0xff]
        %v263 = vld [vmem:[%s259 + $0x14] sm:$0xf]
        %v264 = vld [vmem:[%s259 + $0x18] sm:$0xff]
        %v265 = vld [vmem:[%s259 + $0x20] sm:$0xf]
        %v266 = vld [vmem:[%s259 + $0x24] sm:$0xff]
        %v267 = vld [vmem:[%s259 + $0x2c] sm:$0xf]
        %v268 = vld [vmem:[%s259 + $0x30] sm:$0xff]
        %v269 = vld [vmem:[%s259 + $0x38] sm:$0xf]
        %v270 = vld [vmem:[%s259 + $0x3c] sm:$0xff]
        %v271 = vld [vmem:[%s259 + $0x44] sm:$0xf]
        %v272 = vld [vmem:[%s259 + $0x48] sm:$0xff]
        %v273 = vld [vmem:[%s259 + $0x50] sm:$0xf]
        %v274 = vld [vmem:[%s259 + $0x54] sm:$0xff]
        %v275 = vld [vmem:[%s259 + $0x5c] sm:$0xf]
        %v276 = vld [vmem:[%s259 + $0x60] sm:$0xff]
        %v277 = vld [vmem:[%s259 + $0x68] sm:$0xf]
        %v278 = vld [vmem:[%s259 + $0x6c] sm:$0xff]
        %v279 = vld [vmem:[%s259 + $0x74] sm:$0xf]
        %v280 = vld [vmem:[%s259 + $0x78] sm:$0xff]
        %v281 = vld [vmem:[%s259 + $0x80] sm:$0xf]
        %v282 = vld [vmem:[%s259 + $0x84] sm:$0xff]
        %v283 = vld [vmem:[%s259 + $0x8c] sm:$0xf]
        %v284 = vld [vmem:[%s259 + $0x90] sm:$0xff]
        %v285 = vld [vmem:[%s259 + $0x98] sm:$0xf]
        %v286 = vld [vmem:[%s259 + $0x9c] sm:$0xff]
        %v287 = vld [vmem:[%s259 + $0xa4] sm:$0xf]
        %v288 = vld [vmem:[%s259 + $0xa8] sm:$0xff]
        %v289 = vld [vmem:[%s259 + $0xb0] sm:$0xf]
        %v290 = vld [vmem:[%s259 + $0xb4] sm:$0xff]
        %v291 = vld [vmem:[%s259 + $0xbc] sm:$0xf]
        %v324 = vunpack.c.l.b16 %v260
        %v325 = vunpack.c.h.b16 %v260
        %v326 = vunpack.c.l.b16 %v261
        %v327 = vunpack.c.l.b16 %v262
        %v328 = vunpack.c.h.b16 %v262
        %v329 = vunpack.c.l.b16 %v263
        %v330 = vunpack.c.l.b16 %v264
        %v331 = vunpack.c.h.b16 %v264
        %v332 = vunpack.c.l.b16 %v265
        %v333 = vunpack.c.l.b16 %v266
        %v334 = vunpack.c.h.b16 %v266
        %v335 = vunpack.c.l.b16 %v267
        %v336 = vunpack.c.l.b16 %v268
        %v337 = vunpack.c.h.b16 %v268
        %v338 = vunpack.c.l.b16 %v269
        %v339 = vunpack.c.l.b16 %v270
        %v340 = vunpack.c.h.b16 %v270
        %v341 = vunpack.c.l.b16 %v271
        %v342 = vunpack.c.l.b16 %v272
        %v343 = vunpack.c.h.b16 %v272
        %v344 = vunpack.c.l.b16 %v273
        %v345 = vunpack.c.l.b16 %v274
        %v346 = vunpack.c.h.b16 %v274
        %v347 = vunpack.c.l.b16 %v275
        %v348 = vunpack.c.l.b16 %v276
        %v349 = vunpack.c.h.b16 %v276
        %v350 = vunpack.c.l.b16 %v277
        %v351 = vunpack.c.l.b16 %v278
        %v352 = vunpack.c.h.b16 %v278
        %v353 = vunpack.c.l.b16 %v279
        %v354 = vunpack.c.l.b16 %v280
        %v355 = vunpack.c.h.b16 %v280
        %v356 = vunpack.c.l.b16 %v281
        %v357 = vunpack.c.l.b16 %v282
        %v358 = vunpack.c.h.b16 %v282
        %v359 = vunpack.c.l.b16 %v283
        %v360 = vunpack.c.l.b16 %v284
        %v361 = vunpack.c.h.b16 %v284
        %v362 = vunpack.c.l.b16 %v285
        %v363 = vunpack.c.l.b16 %v286
        %v364 = vunpack.c.h.b16 %v286
        %v365 = vunpack.c.l.b16 %v287
        %v366 = vunpack.c.l.b16 %v288
        %v367 = vunpack.c.h.b16 %v288
        %v368 = vunpack.c.l.b16 %v289
        %v369 = vunpack.c.l.b16 %v290
        %v370 = vunpack.c.h.b16 %v290
        %v371 = vunpack.c.l.b16 %v291
        %v372 = vpack.c.b16 %v327, %v324
        %v373 = vpack.c.b16 %v328, %v325
        %v374 = vpack.c.b16 %v329, %v326
        %v375 = vpack.c.b16 %v333, %v330
        %v376 = vpack.c.b16 %v334, %v331
        %v377 = vpack.c.b16 %v335, %v332
        %v378 = vpack.c.b16 %v339, %v336
        %v379 = vpack.c.b16 %v340, %v337
        %v380 = vpack.c.b16 %v341, %v338
        %v381 = vpack.c.b16 %v345, %v342
        %v382 = vpack.c.b16 %v346, %v343
        %v383 = vpack.c.b16 %v347, %v344
        %v384 = vpack.c.b16 %v351, %v348
        %v385 = vpack.c.b16 %v352, %v349
        %v386 = vpack.c.b16 %v353, %v350
        %v387 = vpack.c.b16 %v357, %v354
        %v388 = vpack.c.b16 %v358, %v355
        %v389 = vpack.c.b16 %v359, %v356
        %v390 = vpack.c.b16 %v363, %v360
        %v391 = vpack.c.b16 %v364, %v361
        %v392 = vpack.c.b16 %v365, %v362
        %v393 = vpack.c.b16 %v369, %v366
        %v394 = vpack.c.b16 %v370, %v367
        %v395 = vpack.c.b16 %v371, %v368
        %420 = vmatprep.subr.bf16.mxu0 %v394
        %421 = vmatpush1.bf16.msra.mxu0 %v393
        %422 = vmatprep.subr.bf16.mxu0 %v391
        %423 = vmatpush1.bf16.msra.mxu0 %v390
        %424 = vmatprep.subr.bf16.mxu0 %v388
        %425 = vmatpush1.bf16.msra.mxu0 %v387
        %426 = vmatprep.subr.bf16.mxu0 %v385
        %427 = vmatpush1.bf16.msra.mxu0 %v384
        %428 = vmatprep.subr.bf16.mxu0 %v382
        %429 = vmatpush1.bf16.msra.mxu0 %v381
        %430 = vmatprep.subr.bf16.mxu0 %v379
        %431 = vmatpush1.bf16.msra.mxu0 %v378
        %432 = vmatprep.subr.bf16.mxu0 %v376
        %433 = vmatpush1.bf16.msra.mxu0 %v375
        %434 = vmatprep.subr.bf16.mxu0 %v373
        %435 = vmatpush1.bf16.msra.mxu0 %v372
        %436 = vmatprep.subr.bf16.mxu0 0
        %437 = vmatpush2.bf16.msra.mxu0 0
        %438 = vmatprep.subr.bf16.mxu0 0
        %439 = vmatpush2.bf16.msra.mxu0 0
        %440 = vmatprep.subr.bf16.mxu0 0
        %441 = vmatpush2.bf16.msra.mxu0 0
        %442 = vmatprep.subr.bf16.mxu0 0
        %443 = vmatpush2.bf16.msra.mxu0 0
        %444 = vmatprep.subr.bf16.mxu0 0
        %445 = vmatpush2.bf16.msra.mxu0 0
        %446 = vmatprep.subr.bf16.mxu0 0
        %447 = vmatpush2.bf16.msra.mxu0 0
        %448 = vmatprep.subr.bf16.mxu0 0
        %449 = vmatpush2.bf16.msra.mxu0 0
        %450 = vmatprep.subr.bf16.mxu0 0
        %451 = vmatpush2.bf16.msra.mxu0 0
        %452 = vmatprep.mubr.bf16.mxu0 0
        %453 = vmatmul.mubr.bf16.gmra.mxu0 %v256
        %v454 = vpop.f32.mrf.mxu0
        %v455 = vadd.f32 0.0, %v454
        %v456 = vpop.f32.mrf.mxu0
        %v457 = vadd.f32 0.0, %v456
        %v458 = vpop.f32.mrf.mxu0
        %v459 = vpop.f32.mrf.mxu0
        %460 = vdwg.mxu0
        %461 = vmatprep.subr.bf16.mxu0 0
        %462 = vmatpush1.bf16.msra.mxu0 %v395
        %463 = vmatprep.subr.bf16.mxu0 0
        %464 = vmatpush1.bf16.msra.mxu0 %v392
        %465 = vmatprep.subr.bf16.mxu0 0
        %466 = vmatpush1.bf16.msra.mxu0 %v389
        %467 = vmatprep.subr.bf16.mxu0 0
        %468 = vmatpush1.bf16.msra.mxu0 %v386
        %469 = vmatprep.subr.bf16.mxu0 0
        %470 = vmatpush1.bf16.msra.mxu0 %v383
        %471 = vmatprep.subr.bf16.mxu0 0
        %472 = vmatpush1.bf16.msra.mxu0 %v380
        %473 = vmatprep.subr.bf16.mxu0 0
        %474 = vmatpush1.bf16.msra.mxu0 %v377
        %475 = vmatprep.subr.bf16.mxu0 0
        %476 = vmatpush1.bf16.msra.mxu0 %v374
        %477 = vmatprep.subr.bf16.mxu0 0
        %478 = vmatpush2.bf16.msra.mxu0 0
        %479 = vmatprep.subr.bf16.mxu0 0
        %480 = vmatpush2.bf16.msra.mxu0 0
        %481 = vmatprep.subr.bf16.mxu0 0
        %482 = vmatpush2.bf16.msra.mxu0 0
        %483 = vmatprep.subr.bf16.mxu0 0
        %484 = vmatpush2.bf16.msra.mxu0 0
        %485 = vmatprep.subr.bf16.mxu0 0
        %486 = vmatpush2.bf16.msra.mxu0 0
        %487 = vmatprep.subr.bf16.mxu0 0
        %488 = vmatpush2.bf16.msra.mxu0 0
        %489 = vmatprep.subr.bf16.mxu0 0
        %490 = vmatpush2.bf16.msra.mxu0 0
        %491 = vmatprep.subr.bf16.mxu0 0
        %492 = vmatpush2.bf16.msra.mxu0 0
        %493 = vmatprep.mubr.bf16.mxu0 0
        %494 = vmatmul.mubr.bf16.gmra.mxu0 %v256
        %v495 = vpop.f32.mrf.mxu0
        %v496 = vadd.f32 0.0, %v495
        %v497 = vpop.f32.mrf.mxu0
        %v498 = vpop.f32.mrf.mxu0
        %v499 = vpop.f32.mrf.mxu0
        %500 = vdwg.mxu0
        %v501 = vpack.c.bf16 %v455, %v455
        %v502 = vpack.c.bf16 %v457, %v457
        %v503 = vpack.c.bf16 %v496, %v496
        %505 = vrot.lane.b32.xlu0 %v501, 112
        %v506 = vpop.permute.xlu0 %505
        %507 = vrot.lane.b32.xlu0 %v501, 96
        %v508 = vpop.permute.xlu0 %507
        %509 = vrot.lane.b32.xlu0 %v501, 80
        %v510 = vpop.permute.xlu0 %509
        %511 = vrot.lane.b32.xlu0 %v501, 64
        %v512 = vpop.permute.xlu0 %511
        %513 = vrot.lane.b32.xlu0 %v501, 48
        %v514 = vpop.permute.xlu0 %513
        %515 = vrot.lane.b32.xlu0 %v501, 32
        %v516 = vpop.permute.xlu0 %515
        %517 = vrot.lane.b32.xlu0 %v501, 16
        %v518 = vpop.permute.xlu0 %517
        %520 = vrot.lane.b32.xlu0 %v502, 112
        %v521 = vpop.permute.xlu0 %520
        %522 = vrot.lane.b32.xlu0 %v502, 96
        %v523 = vpop.permute.xlu0 %522
        %524 = vrot.lane.b32.xlu0 %v502, 80
        %v525 = vpop.permute.xlu0 %524
        %526 = vrot.lane.b32.xlu0 %v502, 64
        %v527 = vpop.permute.xlu0 %526
        %528 = vrot.lane.b32.xlu0 %v502, 48
        %v529 = vpop.permute.xlu0 %528
        %530 = vrot.lane.b32.xlu0 %v502, 32
        %v531 = vpop.permute.xlu0 %530
        %532 = vrot.lane.b32.xlu0 %v502, 16
        %v533 = vpop.permute.xlu0 %532
        %535 = vrot.lane.b32.xlu0 %v503, 112
        %v536 = vpop.permute.xlu0 %535
        %537 = vrot.lane.b32.xlu0 %v503, 96
        %v538 = vpop.permute.xlu0 %537
        %539 = vrot.lane.b32.xlu0 %v503, 80
        %v540 = vpop.permute.xlu0 %539
        %541 = vrot.lane.b32.xlu0 %v503, 64
        %v542 = vpop.permute.xlu0 %541
        %543 = vrot.lane.b32.xlu0 %v503, 48
        %v544 = vpop.permute.xlu0 %543
        %545 = vrot.lane.b32.xlu0 %v503, 32
        %v546 = vpop.permute.xlu0 %545
        %547 = vrot.lane.b32.xlu0 %v503, 16
        %v548 = vpop.permute.xlu0 %547
        %vm549 = vcmask 130048
        %v551 = vsel %vm549, %v501, 0
        %v554 = vsel %vm549, %v502, 0
        %556 = vmatprep.subr.bf16.mxu0 0
        %557 = vmatpush1.bf16.xpose.msra.mxu0 0
        %558 = vmatprep.subr.bf16.mxu0 0
        %559 = vmatpush1.bf16.xpose.msra.mxu0 0
        %560 = vmatprep.subr.bf16.mxu0 0
        %561 = vmatpush1.bf16.xpose.msra.mxu0 0
        %562 = vmatprep.subr.bf16.mxu0 0
        %563 = vmatpush1.bf16.xpose.msra.mxu0 0
        %564 = vmatprep.subr.bf16.mxu0 0
        %565 = vmatpush1.bf16.xpose.msra.mxu0 0
        %566 = vmatprep.subr.bf16.mxu0 0
        %567 = vmatpush1.bf16.xpose.msra.mxu0 0
        %568 = vmatprep.subr.bf16.mxu0 0
        %569 = vmatpush1.bf16.xpose.msra.mxu0 0
        %570 = vmatprep.subr.bf16.mxu0 0
        %571 = vmatpush1.bf16.xpose.msra.mxu0 %v554
        %572 = vmatprep.subr.bf16.mxu0 0
        %573 = vmatpush2.bf16.xpose.msra.mxu0 0
        %574 = vmatprep.subr.bf16.mxu0 0
        %575 = vmatpush2.bf16.xpose.msra.mxu0 0
        %576 = vmatprep.subr.bf16.mxu0 0
        %577 = vmatpush2.bf16.xpose.msra.mxu0 0
        %578 = vmatprep.subr.bf16.mxu0 0
        %579 = vmatpush2.bf16.xpose.msra.mxu0 0
        %580 = vmatprep.subr.bf16.mxu0 0
        %581 = vmatpush2.bf16.xpose.msra.mxu0 0
        %582 = vmatprep.subr.bf16.mxu0 0
        %583 = vmatpush2.bf16.xpose.msra.mxu0 0
        %584 = vmatprep.subr.bf16.mxu0 0
        %585 = vmatpush2.bf16.xpose.msra.mxu0 0
        %586 = vmatprep.subr.bf16.mxu0 0
        %587 = vmatpush2.bf16.xpose.msra.mxu0 0
        %588 = vmatprep.mubr.bf16.mxu0 0
        %589 = vmatmul.mubr.bf16.gmra.mxu0 %v551
        %v590 = vpop.f32.mrf.mxu0
        %v591 = vadd.f32 0.0, %v590
        %v592 = vpop.f32.mrf.mxu0
        %v593 = vpop.f32.mrf.mxu0
        %v594 = vpop.f32.mrf.mxu0
        %595 = vdwg.mxu0
        %v597 = vsel %vm549, %v506, 0
        %v600 = vsel %vm549, %v521, 0
        %602 = vmatprep.subr.bf16.mxu0 0
        %603 = vmatpush1.bf16.xpose.msra.mxu0 0
        %604 = vmatprep.subr.bf16.mxu0 0
        %605 = vmatpush1.bf16.xpose.msra.mxu0 0
        %606 = vmatprep.subr.bf16.mxu0 0
        %607 = vmatpush1.bf16.xpose.msra.mxu0 0
        %608 = vmatprep.subr.bf16.mxu0 0
        %609 = vmatpush1.bf16.xpose.msra.mxu0 0
        %610 = vmatprep.subr.bf16.mxu0 0
        %611 = vmatpush1.bf16.xpose.msra.mxu0 0
        %612 = vmatprep.subr.bf16.mxu0 0
        %613 = vmatpush1.bf16.xpose.msra.mxu0 0
        %614 = vmatprep.subr.bf16.mxu0 0
        %615 = vmatpush1.bf16.xpose.msra.mxu0 0
        %616 = vmatprep.subr.bf16.mxu0 0
        %617 = vmatpush1.bf16.xpose.msra.mxu0 %v600
        %618 = vmatprep.subr.bf16.mxu0 0
        %619 = vmatpush2.bf16.xpose.msra.mxu0 0
        %620 = vmatprep.subr.bf16.mxu0 0
        %621 = vmatpush2.bf16.xpose.msra.mxu0 0
        %622 = vmatprep.subr.bf16.mxu0 0
        %623 = vmatpush2.bf16.xpose.msra.mxu0 0
        %624 = vmatprep.subr.bf16.mxu0 0
        %625 = vmatpush2.bf16.xpose.msra.mxu0 0
        %626 = vmatprep.subr.bf16.mxu0 0
        %627 = vmatpush2.bf16.xpose.msra.mxu0 0
        %628 = vmatprep.subr.bf16.mxu0 0
        %629 = vmatpush2.bf16.xpose.msra.mxu0 0
        %630 = vmatprep.subr.bf16.mxu0 0
        %631 = vmatpush2.bf16.xpose.msra.mxu0 0
        %632 = vmatprep.subr.bf16.mxu0 0
        %633 = vmatpush2.bf16.xpose.msra.mxu0 0
        %634 = vmatprep.mubr.bf16.mxu0 0
        %635 = vmatmul.mubr.bf16.gmra.mxu0 %v597
        %v636 = vpop.f32.mrf.mxu0
        %v637 = vadd.f32 0.0, %v636
        %v638 = vpop.f32.mrf.mxu0
        %v639 = vpop.f32.mrf.mxu0
        %v640 = vpop.f32.mrf.mxu0
        %641 = vdwg.mxu0
        %v643 = vsel %vm549, %v508, 0
        %v646 = vsel %vm549, %v523, 0
        %648 = vmatprep.subr.bf16.mxu0 0
        %649 = vmatpush1.bf16.xpose.msra.mxu0 0
        %650 = vmatprep.subr.bf16.mxu0 0
        %651 = vmatpush1.bf16.xpose.msra.mxu0 0
        %652 = vmatprep.subr.bf16.mxu0 0
        %653 = vmatpush1.bf16.xpose.msra.mxu0 0
        %654 = vmatprep.subr.bf16.mxu0 0
        %655 = vmatpush1.bf16.xpose.msra.mxu0 0
        %656 = vmatprep.subr.bf16.mxu0 0
        %657 = vmatpush1.bf16.xpose.msra.mxu0 0
        %658 = vmatprep.subr.bf16.mxu0 0
        %659 = vmatpush1.bf16.xpose.msra.mxu0 0
        %660 = vmatprep.subr.bf16.mxu0 0
        %661 = vmatpush1.bf16.xpose.msra.mxu0 0
        %662 = vmatprep.subr.bf16.mxu0 0
        %663 = vmatpush1.bf16.xpose.msra.mxu0 %v646
        %664 = vmatprep.subr.bf16.mxu0 0
        %665 = vmatpush2.bf16.xpose.msra.mxu0 0
        %666 = vmatprep.subr.bf16.mxu0 0
        %667 = vmatpush2.bf16.xpose.msra.mxu0 0
        %668 = vmatprep.subr.bf16.mxu0 0
        %669 = vmatpush2.bf16.xpose.msra.mxu0 0
        %670 = vmatprep.subr.bf16.mxu0 0
        %671 = vmatpush2.bf16.xpose.msra.mxu0 0
        %672 = vmatprep.subr.bf16.mxu0 0
        %673 = vmatpush2.bf16.xpose.msra.mxu0 0
        %674 = vmatprep.subr.bf16.mxu0 0
        %675 = vmatpush2.bf16.xpose.msra.mxu0 0
        %676 = vmatprep.subr.bf16.mxu0 0
        %677 = vmatpush2.bf16.xpose.msra.mxu0 0
        %678 = vmatprep.subr.bf16.mxu0 0
        %679 = vmatpush2.bf16.xpose.msra.mxu0 0
        %680 = vmatprep.mubr.bf16.mxu0 0
        %681 = vmatmul.mubr.bf16.gmra.mxu0 %v643
        %v682 = vpop.f32.mrf.mxu0
        %v683 = vadd.f32 0.0, %v682
        %v684 = vpop.f32.mrf.mxu0
        %v685 = vpop.f32.mrf.mxu0
        %v686 = vpop.f32.mrf.mxu0
        %687 = vdwg.mxu0
        %v689 = vsel %vm549, %v510, 0
        %v692 = vsel %vm549, %v525, 0
        %694 = vmatprep.subr.bf16.mxu0 0
        %695 = vmatpush1.bf16.xpose.msra.mxu0 0
        %696 = vmatprep.subr.bf16.mxu0 0
        %697 = vmatpush1.bf16.xpose.msra.mxu0 0
        %698 = vmatprep.subr.bf16.mxu0 0
        %699 = vmatpush1.bf16.xpose.msra.mxu0 0
        %700 = vmatprep.subr.bf16.mxu0 0
        %701 = vmatpush1.bf16.xpose.msra.mxu0 0
        %702 = vmatprep.subr.bf16.mxu0 0
        %703 = vmatpush1.bf16.xpose.msra.mxu0 0
        %704 = vmatprep.subr.bf16.mxu0 0
        %705 = vmatpush1.bf16.xpose.msra.mxu0 0
        %706 = vmatprep.subr.bf16.mxu0 0
        %707 = vmatpush1.bf16.xpose.msra.mxu0 0
        %708 = vmatprep.subr.bf16.mxu0 0
        %709 = vmatpush1.bf16.xpose.msra.mxu0 %v692
        %710 = vmatprep.subr.bf16.mxu0 0
        %711 = vmatpush2.bf16.xpose.msra.mxu0 0
        %712 = vmatprep.subr.bf16.mxu0 0
        %713 = vmatpush2.bf16.xpose.msra.mxu0 0
        %714 = vmatprep.subr.bf16.mxu0 0
        %715 = vmatpush2.bf16.xpose.msra.mxu0 0
        %716 = vmatprep.subr.bf16.mxu0 0
        %717 = vmatpush2.bf16.xpose.msra.mxu0 0
        %718 = vmatprep.subr.bf16.mxu0 0
        %719 = vmatpush2.bf16.xpose.msra.mxu0 0
        %720 = vmatprep.subr.bf16.mxu0 0
        %721 = vmatpush2.bf16.xpose.msra.mxu0 0
        %722 = vmatprep.subr.bf16.mxu0 0
        %723 = vmatpush2.bf16.xpose.msra.mxu0 0
        %724 = vmatprep.subr.bf16.mxu0 0
        %725 = vmatpush2.bf16.xpose.msra.mxu0 0
        %726 = vmatprep.mubr.bf16.mxu0 0
        %727 = vmatmul.mubr.bf16.gmra.mxu0 %v689
        %v728 = vpop.f32.mrf.mxu0
        %v729 = vadd.f32 0.0, %v728
        %v730 = vpop.f32.mrf.mxu0
        %v731 = vpop.f32.mrf.mxu0
        %v732 = vpop.f32.mrf.mxu0
        %733 = vdwg.mxu0
        %v735 = vsel %vm549, %v512, 0
        %v738 = vsel %vm549, %v527, 0
        %740 = vmatprep.subr.bf16.mxu0 0
        %741 = vmatpush1.bf16.xpose.msra.mxu0 0
        %742 = vmatprep.subr.bf16.mxu0 0
        %743 = vmatpush1.bf16.xpose.msra.mxu0 0
        %744 = vmatprep.subr.bf16.mxu0 0
        %745 = vmatpush1.bf16.xpose.msra.mxu0 0
        %746 = vmatprep.subr.bf16.mxu0 0
        %747 = vmatpush1.bf16.xpose.msra.mxu0 0
        %748 = vmatprep.subr.bf16.mxu0 0
        %749 = vmatpush1.bf16.xpose.msra.mxu0 0
        %750 = vmatprep.subr.bf16.mxu0 0
        %751 = vmatpush1.bf16.xpose.msra.mxu0 0
        %752 = vmatprep.subr.bf16.mxu0 0
        %753 = vmatpush1.bf16.xpose.msra.mxu0 0
        %754 = vmatprep.subr.bf16.mxu0 0
        %755 = vmatpush1.bf16.xpose.msra.mxu0 %v738
        %756 = vmatprep.subr.bf16.mxu0 0
        %757 = vmatpush2.bf16.xpose.msra.mxu0 0
        %758 = vmatprep.subr.bf16.mxu0 0
        %759 = vmatpush2.bf16.xpose.msra.mxu0 0
        %760 = vmatprep.subr.bf16.mxu0 0
        %761 = vmatpush2.bf16.xpose.msra.mxu0 0
        %762 = vmatprep.subr.bf16.mxu0 0
        %763 = vmatpush2.bf16.xpose.msra.mxu0 0
        %764 = vmatprep.subr.bf16.mxu0 0
        %765 = vmatpush2.bf16.xpose.msra.mxu0 0
        %766 = vmatprep.subr.bf16.mxu0 0
        %767 = vmatpush2.bf16.xpose.msra.mxu0 0
        %768 = vmatprep.subr.bf16.mxu0 0
        %769 = vmatpush2.bf16.xpose.msra.mxu0 0
        %770 = vmatprep.subr.bf16.mxu0 0
        %771 = vmatpush2.bf16.xpose.msra.mxu0 0
        %772 = vmatprep.mubr.bf16.mxu0 0
        %773 = vmatmul.mubr.bf16.gmra.mxu0 %v735
        %v774 = vpop.f32.mrf.mxu0
        %v775 = vadd.f32 0.0, %v774
        %v776 = vpop.f32.mrf.mxu0
        %v777 = vpop.f32.mrf.mxu0
        %v778 = vpop.f32.mrf.mxu0
        %779 = vdwg.mxu0
        %v781 = vsel %vm549, %v514, 0
        %v784 = vsel %vm549, %v529, 0
        %786 = vmatprep.subr.bf16.mxu0 0
        %787 = vmatpush1.bf16.xpose.msra.mxu0 0
        %788 = vmatprep.subr.bf16.mxu0 0
        %789 = vmatpush1.bf16.xpose.msra.mxu0 0
        %790 = vmatprep.subr.bf16.mxu0 0
        %791 = vmatpush1.bf16.xpose.msra.mxu0 0
        %792 = vmatprep.subr.bf16.mxu0 0
        %793 = vmatpush1.bf16.xpose.msra.mxu0 0
        %794 = vmatprep.subr.bf16.mxu0 0
        %795 = vmatpush1.bf16.xpose.msra.mxu0 0
        %796 = vmatprep.subr.bf16.mxu0 0
        %797 = vmatpush1.bf16.xpose.msra.mxu0 0
        %798 = vmatprep.subr.bf16.mxu0 0
        %799 = vmatpush1.bf16.xpose.msra.mxu0 0
        %800 = vmatprep.subr.bf16.mxu0 0
        %801 = vmatpush1.bf16.xpose.msra.mxu0 %v784
        %802 = vmatprep.subr.bf16.mxu0 0
        %803 = vmatpush2.bf16.xpose.msra.mxu0 0
        %804 = vmatprep.subr.bf16.mxu0 0
        %805 = vmatpush2.bf16.xpose.msra.mxu0 0
        %806 = vmatprep.subr.bf16.mxu0 0
        %807 = vmatpush2.bf16.xpose.msra.mxu0 0
        %808 = vmatprep.subr.bf16.mxu0 0
        %809 = vmatpush2.bf16.xpose.msra.mxu0 0
        %810 = vmatprep.subr.bf16.mxu0 0
        %811 = vmatpush2.bf16.xpose.msra.mxu0 0
        %812 = vmatprep.subr.bf16.mxu0 0
        %813 = vmatpush2.bf16.xpose.msra.mxu0 0
        %814 = vmatprep.subr.bf16.mxu0 0
        %815 = vmatpush2.bf16.xpose.msra.mxu0 0
        %816 = vmatprep.subr.bf16.mxu0 0
        %817 = vmatpush2.bf16.xpose.msra.mxu0 0
        %818 = vmatprep.mubr.bf16.mxu0 0
        %819 = vmatmul.mubr.bf16.gmra.mxu0 %v781
        %v820 = vpop.f32.mrf.mxu0
        %v821 = vadd.f32 0.0, %v820
        %v822 = vpop.f32.mrf.mxu0
        %v823 = vpop.f32.mrf.mxu0
        %v824 = vpop.f32.mrf.mxu0
        %825 = vdwg.mxu0
        %v827 = vsel %vm549, %v516, 0
        %v830 = vsel %vm549, %v531, 0
        %832 = vmatprep.subr.bf16.mxu0 0
        %833 = vmatpush1.bf16.xpose.msra.mxu0 0
        %834 = vmatprep.subr.bf16.mxu0 0
        %835 = vmatpush1.bf16.xpose.msra.mxu0 0
        %836 = vmatprep.subr.bf16.mxu0 0
        %837 = vmatpush1.bf16.xpose.msra.mxu0 0
        %838 = vmatprep.subr.bf16.mxu0 0
        %839 = vmatpush1.bf16.xpose.msra.mxu0 0
        %840 = vmatprep.subr.bf16.mxu0 0
        %841 = vmatpush1.bf16.xpose.msra.mxu0 0
        %842 = vmatprep.subr.bf16.mxu0 0
        %843 = vmatpush1.bf16.xpose.msra.mxu0 0
        %844 = vmatprep.subr.bf16.mxu0 0
        %845 = vmatpush1.bf16.xpose.msra.mxu0 0
        %846 = vmatprep.subr.bf16.mxu0 0
        %847 = vmatpush1.bf16.xpose.msra.mxu0 %v830
        %848 = vmatprep.subr.bf16.mxu0 0
        %849 = vmatpush2.bf16.xpose.msra.mxu0 0
        %850 = vmatprep.subr.bf16.mxu0 0
        %851 = vmatpush2.bf16.xpose.msra.mxu0 0
        %852 = vmatprep.subr.bf16.mxu0 0
        %853 = vmatpush2.bf16.xpose.msra.mxu0 0
        %854 = vmatprep.subr.bf16.mxu0 0
        %855 = vmatpush2.bf16.xpose.msra.mxu0 0
        %856 = vmatprep.subr.bf16.mxu0 0
        %857 = vmatpush2.bf16.xpose.msra.mxu0 0
        %858 = vmatprep.subr.bf16.mxu0 0
        %859 = vmatpush2.bf16.xpose.msra.mxu0 0
        %860 = vmatprep.subr.bf16.mxu0 0
        %861 = vmatpush2.bf16.xpose.msra.mxu0 0
        %862 = vmatprep.subr.bf16.mxu0 0
        %863 = vmatpush2.bf16.xpose.msra.mxu0 0
        %864 = vmatprep.mubr.bf16.mxu0 0
        %865 = vmatmul.mubr.bf16.gmra.mxu0 %v827
        %v866 = vpop.f32.mrf.mxu0
        %v867 = vadd.f32 0.0, %v866
        %v868 = vpop.f32.mrf.mxu0
        %v869 = vpop.f32.mrf.mxu0
        %v870 = vpop.f32.mrf.mxu0
        %871 = vdwg.mxu0
        %v873 = vsel %vm549, %v518, 0
        %v876 = vsel %vm549, %v533, 0
        %878 = vmatprep.subr.bf16.mxu0 0
        %879 = vmatpush1.bf16.xpose.msra.mxu0 0
        %880 = vmatprep.subr.bf16.mxu0 0
        %881 = vmatpush1.bf16.xpose.msra.mxu0 0
        %882 = vmatprep.subr.bf16.mxu0 0
        %883 = vmatpush1.bf16.xpose.msra.mxu0 0
        %884 = vmatprep.subr.bf16.mxu0 0
        %885 = vmatpush1.bf16.xpose.msra.mxu0 0
        %886 = vmatprep.subr.bf16.mxu0 0
        %887 = vmatpush1.bf16.xpose.msra.mxu0 0
        %888 = vmatprep.subr.bf16.mxu0 0
        %889 = vmatpush1.bf16.xpose.msra.mxu0 0
        %890 = vmatprep.subr.bf16.mxu0 0
        %891 = vmatpush1.bf16.xpose.msra.mxu0 0
        %892 = vmatprep.subr.bf16.mxu0 0
        %893 = vmatpush1.bf16.xpose.msra.mxu0 %v876
        %894 = vmatprep.subr.bf16.mxu0 0
        %895 = vmatpush2.bf16.xpose.msra.mxu0 0
        %896 = vmatprep.subr.bf16.mxu0 0
        %897 = vmatpush2.bf16.xpose.msra.mxu0 0
        %898 = vmatprep.subr.bf16.mxu0 0
        %899 = vmatpush2.bf16.xpose.msra.mxu0 0
        %900 = vmatprep.subr.bf16.mxu0 0
        %901 = vmatpush2.bf16.xpose.msra.mxu0 0
        %902 = vmatprep.subr.bf16.mxu0 0
        %903 = vmatpush2.bf16.xpose.msra.mxu0 0
        %904 = vmatprep.subr.bf16.mxu0 0
        %905 = vmatpush2.bf16.xpose.msra.mxu0 0
        %906 = vmatprep.subr.bf16.mxu0 0
        %907 = vmatpush2.bf16.xpose.msra.mxu0 0
        %908 = vmatprep.subr.bf16.mxu0 0
        %909 = vmatpush2.bf16.xpose.msra.mxu0 0
        %910 = vmatprep.mubr.bf16.mxu0 0
        %911 = vmatmul.mubr.bf16.gmra.mxu0 %v873
        %v912 = vpop.f32.mrf.mxu0
        %v913 = vadd.f32 0.0, %v912
        %v914 = vpop.f32.mrf.mxu0
        %v915 = vpop.f32.mrf.mxu0
        %v916 = vpop.f32.mrf.mxu0
        %917 = vdwg.mxu0
        %vm918 = vcmask 64512
        %v919 = vsel %vm918, %v591, -inf
        %920 = vmax.xlane.f32.xlu0 %v919
        %v921 = vpop.xlane.xlu0 %920
        %v922 = vsel %vm918, %v637, -inf
        %923 = vmax.xlane.f32.xlu0 %v922
        %v924 = vpop.xlane.xlu0 %923
        %v925 = vsel %vm918, %v683, -inf
        %926 = vmax.xlane.f32.xlu0 %v925
        %v927 = vpop.xlane.xlu0 %926
        %v928 = vsel %vm918, %v729, -inf
        %929 = vmax.xlane.f32.xlu0 %v928
        %v930 = vpop.xlane.xlu0 %929
        %v931 = vsel %vm918, %v775, -inf
        %932 = vmax.xlane.f32.xlu0 %v931
        %v933 = vpop.xlane.xlu0 %932
        %v934 = vsel %vm918, %v821, -inf
        %935 = vmax.xlane.f32.xlu0 %v934
        %v936 = vpop.xlane.xlu0 %935
        %v937 = vsel %vm918, %v867, -inf
        %938 = vmax.xlane.f32.xlu0 %v937
        %v939 = vpop.xlane.xlu0 %938
        %v940 = vsel %vm918, %v913, -inf
        %941 = vmax.xlane.f32.xlu0 %v940
        %v942 = vpop.xlane.xlu0 %941
        %v943 = vsub.f32 %v591, %v921
        %v944 = vsub.f32 %v637, %v924
        %v945 = vsub.f32 %v683, %v927
        %v946 = vsub.f32 %v729, %v930
        %v947 = vsub.f32 %v775, %v933
        %v948 = vsub.f32 %v821, %v936
        %v949 = vsub.f32 %v867, %v939
        %v950 = vsub.f32 %v913, %v942
        %v951 = vmul.f32 %v943, 1.442695
        %v952 = vpow.pop %v951
        %v953 = vmul.f32 %v944, 1.442695
        %v954 = vpow.pop %v953
        %v955 = vmul.f32 %v945, 1.442695
        %v956 = vpow.pop %v955
        %v957 = vmul.f32 %v946, 1.442695
        %v958 = vpow.pop %v957
        %v959 = vmul.f32 %v947, 1.442695
        %v960 = vpow.pop %v959
        %v961 = vmul.f32 %v948, 1.442695
        %v962 = vpow.pop %v961
        %v963 = vmul.f32 %v949, 1.442695
        %v964 = vpow.pop %v963
        %v965 = vmul.f32 %v950, 1.442695
        %v966 = vpow.pop %v965
        %v967 = vsel %vm918, %v952, 0.0
        %968 = vadd.xlane.f32.xlu0 %v967
        %v969 = vpop.xlane.xlu0 %968
        %v970 = vsel %vm918, %v954, 0.0
        %971 = vadd.xlane.f32.xlu0 %v970
        %v972 = vpop.xlane.xlu0 %971
        %v973 = vsel %vm918, %v956, 0.0
        %974 = vadd.xlane.f32.xlu0 %v973
        %v975 = vpop.xlane.xlu0 %974
        %v976 = vsel %vm918, %v958, 0.0
        %977 = vadd.xlane.f32.xlu0 %v976
        %v978 = vpop.xlane.xlu0 %977
        %v979 = vsel %vm918, %v960, 0.0
        %980 = vadd.xlane.f32.xlu0 %v979
        %v981 = vpop.xlane.xlu0 %980
        %v982 = vsel %vm918, %v962, 0.0
        %983 = vadd.xlane.f32.xlu0 %v982
        %v984 = vpop.xlane.xlu0 %983
        %v985 = vsel %vm918, %v964, 0.0
        %986 = vadd.xlane.f32.xlu0 %v985
        %v987 = vpop.xlane.xlu0 %986
        %v988 = vsel %vm918, %v966, 0.0
        %989 = vadd.xlane.f32.xlu0 %v988
        %v990 = vpop.xlane.xlu0 %989
        %v991 = vpack.c.bf16 %v952, %v952
        %v992 = vpack.c.bf16 %v954, %v954
        %v993 = vpack.c.bf16 %v956, %v956
        %v994 = vpack.c.bf16 %v958, %v958
        %v995 = vpack.c.bf16 %v960, %v960
        %v996 = vpack.c.bf16 %v962, %v962
        %v997 = vpack.c.bf16 %v964, %v964
        %v998 = vpack.c.bf16 %v966, %v966
        %v1000 = vsel %vm918, %v991, 0
        %vm1002 = vcmask 1043456
        %v1004 = vsel %vm1002, %v503, 0
        %1006 = vmatprep.subr.bf16.mxu0 0
        %1007 = vmatpush1.bf16.msra.mxu0 0
        %1008 = vmatprep.subr.bf16.mxu0 0
        %1009 = vmatpush1.bf16.msra.mxu0 0
        %1010 = vmatprep.subr.bf16.mxu0 0
        %1011 = vmatpush1.bf16.msra.mxu0 0
        %1012 = vmatprep.subr.bf16.mxu0 0
        %1013 = vmatpush1.bf16.msra.mxu0 0
        %1014 = vmatprep.subr.bf16.mxu0 0
        %1015 = vmatpush1.bf16.msra.mxu0 0
        %1016 = vmatprep.subr.bf16.mxu0 0
        %1017 = vmatpush1.bf16.msra.mxu0 0
        %1018 = vmatprep.subr.bf16.mxu0 0
        %1019 = vmatpush1.bf16.msra.mxu0 0
        %1020 = vmatprep.subr.bf16.mxu0 0
        %1021 = vmatpush1.bf16.msra.mxu0 %v1004
        %1022 = vmatprep.subr.bf16.mxu0 0
        %1023 = vmatpush2.bf16.msra.mxu0 0
        %1024 = vmatprep.subr.bf16.mxu0 0
        %1025 = vmatpush2.bf16.msra.mxu0 0
        %1026 = vmatprep.subr.bf16.mxu0 0
        %1027 = vmatpush2.bf16.msra.mxu0 0
        %1028 = vmatprep.subr.bf16.mxu0 0
        %1029 = vmatpush2.bf16.msra.mxu0 0
        %1030 = vmatprep.subr.bf16.mxu0 0
        %1031 = vmatpush2.bf16.msra.mxu0 0
        %1032 = vmatprep.subr.bf16.mxu0 0
        %1033 = vmatpush2.bf16.msra.mxu0 0
        %1034 = vmatprep.subr.bf16.mxu0 0
        %1035 = vmatpush2.bf16.msra.mxu0 0
        %1036 = vmatprep.subr.bf16.mxu0 0
        %1037 = vmatpush2.bf16.msra.mxu0 0
        %1038 = vmatprep.mubr.bf16.mxu0 0
        %1039 = vmatmul.mubr.bf16.gmra.mxu0 %v1000
        %v1040 = vpop.f32.mrf.mxu0
        %v1041 = vadd.f32 0.0, %v1040
        %v1042 = vpop.f32.mrf.mxu0
        %v1043 = vpop.f32.mrf.mxu0
        %v1044 = vpop.f32.mrf.mxu0
        %1045 = vdwg.mxu0
        %v1047 = vsel %vm918, %v992, 0
        %v1050 = vsel %vm1002, %v536, 0
        %1052 = vmatprep.subr.bf16.mxu0 0
        %1053 = vmatpush1.bf16.msra.mxu0 0
        %1054 = vmatprep.subr.bf16.mxu0 0
        %1055 = vmatpush1.bf16.msra.mxu0 0
        %1056 = vmatprep.subr.bf16.mxu0 0
        %1057 = vmatpush1.bf16.msra.mxu0 0
        %1058 = vmatprep.subr.bf16.mxu0 0
        %1059 = vmatpush1.bf16.msra.mxu0 0
        %1060 = vmatprep.subr.bf16.mxu0 0
        %1061 = vmatpush1.bf16.msra.mxu0 0
        %1062 = vmatprep.subr.bf16.mxu0 0
        %1063 = vmatpush1.bf16.msra.mxu0 0
        %1064 = vmatprep.subr.bf16.mxu0 0
        %1065 = vmatpush1.bf16.msra.mxu0 0
        %1066 = vmatprep.subr.bf16.mxu0 0
        %1067 = vmatpush1.bf16.msra.mxu0 %v1050
        %1068 = vmatprep.subr.bf16.mxu0 0
        %1069 = vmatpush2.bf16.msra.mxu0 0
        %1070 = vmatprep.subr.bf16.mxu0 0
        %1071 = vmatpush2.bf16.msra.mxu0 0
        %1072 = vmatprep.subr.bf16.mxu0 0
        %1073 = vmatpush2.bf16.msra.mxu0 0
        %1074 = vmatprep.subr.bf16.mxu0 0
        %1075 = vmatpush2.bf16.msra.mxu0 0
        %1076 = vmatprep.subr.bf16.mxu0 0
        %1077 = vmatpush2.bf16.msra.mxu0 0
        %1078 = vmatprep.subr.bf16.mxu0 0
        %1079 = vmatpush2.bf16.msra.mxu0 0
        %1080 = vmatprep.subr.bf16.mxu0 0
        %1081 = vmatpush2.bf16.msra.mxu0 0
        %1082 = vmatprep.subr.bf16.mxu0 0
        %1083 = vmatpush2.bf16.msra.mxu0 0
        %1084 = vmatprep.mubr.bf16.mxu0 0
        %1085 = vmatmul.mubr.bf16.gmra.mxu0 %v1047
        %v1086 = vpop.f32.mrf.mxu0
        %v1087 = vadd.f32 0.0, %v1086
        %v1088 = vpop.f32.mrf.mxu0
        %v1089 = vpop.f32.mrf.mxu0
        %v1090 = vpop.f32.mrf.mxu0
        %1091 = vdwg.mxu0
        %v1093 = vsel %vm918, %v993, 0
        %v1096 = vsel %vm1002, %v538, 0
        %1098 = vmatprep.subr.bf16.mxu0 0
        %1099 = vmatpush1.bf16.msra.mxu0 0
        %1100 = vmatprep.subr.bf16.mxu0 0
        %1101 = vmatpush1.bf16.msra.mxu0 0
        %1102 = vmatprep.subr.bf16.mxu0 0
        %1103 = vmatpush1.bf16.msra.mxu0 0
        %1104 = vmatprep.subr.bf16.mxu0 0
        %1105 = vmatpush1.bf16.msra.mxu0 0
        %1106 = vmatprep.subr.bf16.mxu0 0
        %1107 = vmatpush1.bf16.msra.mxu0 0
        %1108 = vmatprep.subr.bf16.mxu0 0
        %1109 = vmatpush1.bf16.msra.mxu0 0
        %1110 = vmatprep.subr.bf16.mxu0 0
        %1111 = vmatpush1.bf16.msra.mxu0 0
        %1112 = vmatprep.subr.bf16.mxu0 0
        %1113 = vmatpush1.bf16.msra.mxu0 %v1096
        %1114 = vmatprep.subr.bf16.mxu0 0
        %1115 = vmatpush2.bf16.msra.mxu0 0
        %1116 = vmatprep.subr.bf16.mxu0 0
        %1117 = vmatpush2.bf16.msra.mxu0 0
        %1118 = vmatprep.subr.bf16.mxu0 0
        %1119 = vmatpush2.bf16.msra.mxu0 0
        %1120 = vmatprep.subr.bf16.mxu0 0
        %1121 = vmatpush2.bf16.msra.mxu0 0
        %1122 = vmatprep.subr.bf16.mxu0 0
        %1123 = vmatpush2.bf16.msra.mxu0 0
        %1124 = vmatprep.subr.bf16.mxu0 0
        %1125 = vmatpush2.bf16.msra.mxu0 0
        %1126 = vmatprep.subr.bf16.mxu0 0
        %1127 = vmatpush2.bf16.msra.mxu0 0
        %1128 = vmatprep.subr.bf16.mxu0 0
        %1129 = vmatpush2.bf16.msra.mxu0 0
        %1130 = vmatprep.mubr.bf16.mxu0 0
        %1131 = vmatmul.mubr.bf16.gmra.mxu0 %v1093
        %v1132 = vpop.f32.mrf.mxu0
        %v1133 = vadd.f32 0.0, %v1132
        %v1134 = vpop.f32.mrf.mxu0
        %v1135 = vpop.f32.mrf.mxu0
        %v1136 = vpop.f32.mrf.mxu0
        %1137 = vdwg.mxu0
        %v1139 = vsel %vm918, %v994, 0
        %v1142 = vsel %vm1002, %v540, 0
        %1144 = vmatprep.subr.bf16.mxu0 0
        %1145 = vmatpush1.bf16.msra.mxu0 0
        %1146 = vmatprep.subr.bf16.mxu0 0
        %1147 = vmatpush1.bf16.msra.mxu0 0
        %1148 = vmatprep.subr.bf16.mxu0 0
        %1149 = vmatpush1.bf16.msra.mxu0 0
        %1150 = vmatprep.subr.bf16.mxu0 0
        %1151 = vmatpush1.bf16.msra.mxu0 0
        %1152 = vmatprep.subr.bf16.mxu0 0
        %1153 = vmatpush1.bf16.msra.mxu0 0
        %1154 = vmatprep.subr.bf16.mxu0 0
        %1155 = vmatpush1.bf16.msra.mxu0 0
        %1156 = vmatprep.subr.bf16.mxu0 0
        %1157 = vmatpush1.bf16.msra.mxu0 0
        %1158 = vmatprep.subr.bf16.mxu0 0
        %1159 = vmatpush1.bf16.msra.mxu0 %v1142
        %1160 = vmatprep.subr.bf16.mxu0 0
        %1161 = vmatpush2.bf16.msra.mxu0 0
        %1162 = vmatprep.subr.bf16.mxu0 0
        %1163 = vmatpush2.bf16.msra.mxu0 0
        %1164 = vmatprep.subr.bf16.mxu0 0
        %1165 = vmatpush2.bf16.msra.mxu0 0
        %1166 = vmatprep.subr.bf16.mxu0 0
        %1167 = vmatpush2.bf16.msra.mxu0 0
        %1168 = vmatprep.subr.bf16.mxu0 0
        %1169 = vmatpush2.bf16.msra.mxu0 0
        %1170 = vmatprep.subr.bf16.mxu0 0
        %1171 = vmatpush2.bf16.msra.mxu0 0
        %1172 = vmatprep.subr.bf16.mxu0 0
        %1173 = vmatpush2.bf16.msra.mxu0 0
        %1174 = vmatprep.subr.bf16.mxu0 0
        %1175 = vmatpush2.bf16.msra.mxu0 0
        %1176 = vmatprep.mubr.bf16.mxu0 0
        %1177 = vmatmul.mubr.bf16.gmra.mxu0 %v1139
        %v1178 = vpop.f32.mrf.mxu0
        %v1179 = vadd.f32 0.0, %v1178
        %v1180 = vpop.f32.mrf.mxu0
        %v1181 = vpop.f32.mrf.mxu0
        %v1182 = vpop.f32.mrf.mxu0
        %1183 = vdwg.mxu0
        %v1185 = vsel %vm918, %v995, 0
        %v1188 = vsel %vm1002, %v542, 0
        %1190 = vmatprep.subr.bf16.mxu0 0
        %1191 = vmatpush1.bf16.msra.mxu0 0
        %1192 = vmatprep.subr.bf16.mxu0 0
        %1193 = vmatpush1.bf16.msra.mxu0 0
        %1194 = vmatprep.subr.bf16.mxu0 0
        %1195 = vmatpush1.bf16.msra.mxu0 0
        %1196 = vmatprep.subr.bf16.mxu0 0
        %1197 = vmatpush1.bf16.msra.mxu0 0
        %1198 = vmatprep.subr.bf16.mxu0 0
        %1199 = vmatpush1.bf16.msra.mxu0 0
        %1200 = vmatprep.subr.bf16.mxu0 0
        %1201 = vmatpush1.bf16.msra.mxu0 0
        %1202 = vmatprep.subr.bf16.mxu0 0
        %1203 = vmatpush1.bf16.msra.mxu0 0
        %1204 = vmatprep.subr.bf16.mxu0 0
        %1205 = vmatpush1.bf16.msra.mxu0 %v1188
        %1206 = vmatprep.subr.bf16.mxu0 0
        %1207 = vmatpush2.bf16.msra.mxu0 0
        %1208 = vmatprep.subr.bf16.mxu0 0
        %1209 = vmatpush2.bf16.msra.mxu0 0
        %1210 = vmatprep.subr.bf16.mxu0 0
        %1211 = vmatpush2.bf16.msra.mxu0 0
        %1212 = vmatprep.subr.bf16.mxu0 0
        %1213 = vmatpush2.bf16.msra.mxu0 0
        %1214 = vmatprep.subr.bf16.mxu0 0
        %1215 = vmatpush2.bf16.msra.mxu0 0
        %1216 = vmatprep.subr.bf16.mxu0 0
        %1217 = vmatpush2.bf16.msra.mxu0 0
        %1218 = vmatprep.subr.bf16.mxu0 0
        %1219 = vmatpush2.bf16.msra.mxu0 0
        %1220 = vmatprep.subr.bf16.mxu0 0
        %1221 = vmatpush2.bf16.msra.mxu0 0
        %1222 = vmatprep.mubr.bf16.mxu0 0
        %1223 = vmatmul.mubr.bf16.gmra.mxu0 %v1185
        %v1224 = vpop.f32.mrf.mxu0
        %v1225 = vadd.f32 0.0, %v1224
        %v1226 = vpop.f32.mrf.mxu0
        %v1227 = vpop.f32.mrf.mxu0
        %v1228 = vpop.f32.mrf.mxu0
        %1229 = vdwg.mxu0
        %v1231 = vsel %vm918, %v996, 0
        %v1234 = vsel %vm1002, %v544, 0
        %1236 = vmatprep.subr.bf16.mxu0 0
        %1237 = vmatpush1.bf16.msra.mxu0 0
        %1238 = vmatprep.subr.bf16.mxu0 0
        %1239 = vmatpush1.bf16.msra.mxu0 0
        %1240 = vmatprep.subr.bf16.mxu0 0
        %1241 = vmatpush1.bf16.msra.mxu0 0
        %1242 = vmatprep.subr.bf16.mxu0 0
        %1243 = vmatpush1.bf16.msra.mxu0 0
        %1244 = vmatprep.subr.bf16.mxu0 0
        %1245 = vmatpush1.bf16.msra.mxu0 0
        %1246 = vmatprep.subr.bf16.mxu0 0
        %1247 = vmatpush1.bf16.msra.mxu0 0
        %1248 = vmatprep.subr.bf16.mxu0 0
        %1249 = vmatpush1.bf16.msra.mxu0 0
        %1250 = vmatprep.subr.bf16.mxu0 0
        %1251 = vmatpush1.bf16.msra.mxu0 %v1234
        %1252 = vmatprep.subr.bf16.mxu0 0
        %1253 = vmatpush2.bf16.msra.mxu0 0
        %1254 = vmatprep.subr.bf16.mxu0 0
        %1255 = vmatpush2.bf16.msra.mxu0 0
        %1256 = vmatprep.subr.bf16.mxu0 0
        %1257 = vmatpush2.bf16.msra.mxu0 0
        %1258 = vmatprep.subr.bf16.mxu0 0
        %1259 = vmatpush2.bf16.msra.mxu0 0
        %1260 = vmatprep.subr.bf16.mxu0 0
        %1261 = vmatpush2.bf16.msra.mxu0 0
        %1262 = vmatprep.subr.bf16.mxu0 0
        %1263 = vmatpush2.bf16.msra.mxu0 0
        %1264 = vmatprep.subr.bf16.mxu0 0
        %1265 = vmatpush2.bf16.msra.mxu0 0
        %1266 = vmatprep.subr.bf16.mxu0 0
        %1267 = vmatpush2.bf16.msra.mxu0 0
        %1268 = vmatprep.mubr.bf16.mxu0 0
        %1269 = vmatmul.mubr.bf16.gmra.mxu0 %v1231
        %v1270 = vpop.f32.mrf.mxu0
        %v1271 = vadd.f32 0.0, %v1270
        %v1272 = vpop.f32.mrf.mxu0
        %v1273 = vpop.f32.mrf.mxu0
        %v1274 = vpop.f32.mrf.mxu0
        %1275 = vdwg.mxu0
        %v1277 = vsel %vm918, %v997, 0
        %v1280 = vsel %vm1002, %v546, 0
        %1282 = vmatprep.subr.bf16.mxu0 0
        %1283 = vmatpush1.bf16.msra.mxu0 0
        %1284 = vmatprep.subr.bf16.mxu0 0
        %1285 = vmatpush1.bf16.msra.mxu0 0
        %1286 = vmatprep.subr.bf16.mxu0 0
        %1287 = vmatpush1.bf16.msra.mxu0 0
        %1288 = vmatprep.subr.bf16.mxu0 0
        %1289 = vmatpush1.bf16.msra.mxu0 0
        %1290 = vmatprep.subr.bf16.mxu0 0
        %1291 = vmatpush1.bf16.msra.mxu0 0
        %1292 = vmatprep.subr.bf16.mxu0 0
        %1293 = vmatpush1.bf16.msra.mxu0 0
        %1294 = vmatprep.subr.bf16.mxu0 0
        %1295 = vmatpush1.bf16.msra.mxu0 0
        %1296 = vmatprep.subr.bf16.mxu0 0
        %1297 = vmatpush1.bf16.msra.mxu0 %v1280
        %1298 = vmatprep.subr.bf16.mxu0 0
        %1299 = vmatpush2.bf16.msra.mxu0 0
        %1300 = vmatprep.subr.bf16.mxu0 0
        %1301 = vmatpush2.bf16.msra.mxu0 0
        %1302 = vmatprep.subr.bf16.mxu0 0
        %1303 = vmatpush2.bf16.msra.mxu0 0
        %1304 = vmatprep.subr.bf16.mxu0 0
        %1305 = vmatpush2.bf16.msra.mxu0 0
        %1306 = vmatprep.subr.bf16.mxu0 0
        %1307 = vmatpush2.bf16.msra.mxu0 0
        %1308 = vmatprep.subr.bf16.mxu0 0
        %1309 = vmatpush2.bf16.msra.mxu0 0
        %1310 = vmatprep.subr.bf16.mxu0 0
        %1311 = vmatpush2.bf16.msra.mxu0 0
        %1312 = vmatprep.subr.bf16.mxu0 0
        %1313 = vmatpush2.bf16.msra.mxu0 0
        %1314 = vmatprep.mubr.bf16.mxu0 0
        %1315 = vmatmul.mubr.bf16.gmra.mxu0 %v1277
        %v1316 = vpop.f32.mrf.mxu0
        %v1317 = vadd.f32 0.0, %v1316
        %v1318 = vpop.f32.mrf.mxu0
        %v1319 = vpop.f32.mrf.mxu0
        %v1320 = vpop.f32.mrf.mxu0
        %1321 = vdwg.mxu0
        %v1323 = vsel %vm918, %v998, 0
        %v1326 = vsel %vm1002, %v548, 0
        %1328 = vmatprep.subr.bf16.mxu0 0
        %1329 = vmatpush1.bf16.msra.mxu0 0
        %1330 = vmatprep.subr.bf16.mxu0 0
        %1331 = vmatpush1.bf16.msra.mxu0 0
        %1332 = vmatprep.subr.bf16.mxu0 0
        %1333 = vmatpush1.bf16.msra.mxu0 0
        %1334 = vmatprep.subr.bf16.mxu0 0
        %1335 = vmatpush1.bf16.msra.mxu0 0
        %1336 = vmatprep.subr.bf16.mxu0 0
        %1337 = vmatpush1.bf16.msra.mxu0 0
        %1338 = vmatprep.subr.bf16.mxu0 0
        %1339 = vmatpush1.bf16.msra.mxu0 0
        %1340 = vmatprep.subr.bf16.mxu0 0
        %1341 = vmatpush1.bf16.msra.mxu0 0
        %1342 = vmatprep.subr.bf16.mxu0 0
        %1343 = vmatpush1.bf16.msra.mxu0 %v1326
        %1344 = vmatprep.subr.bf16.mxu0 0
        %1345 = vmatpush2.bf16.msra.mxu0 0
        %1346 = vmatprep.subr.bf16.mxu0 0
        %1347 = vmatpush2.bf16.msra.mxu0 0
        %1348 = vmatprep.subr.bf16.mxu0 0
        %1349 = vmatpush2.bf16.msra.mxu0 0
        %1350 = vmatprep.subr.bf16.mxu0 0
        %1351 = vmatpush2.bf16.msra.mxu0 0
        %1352 = vmatprep.subr.bf16.mxu0 0
        %1353 = vmatpush2.bf16.msra.mxu0 0
        %1354 = vmatprep.subr.bf16.mxu0 0
        %1355 = vmatpush2.bf16.msra.mxu0 0
        %1356 = vmatprep.subr.bf16.mxu0 0
        %1357 = vmatpush2.bf16.msra.mxu0 0
        %1358 = vmatprep.subr.bf16.mxu0 0
        %1359 = vmatpush2.bf16.msra.mxu0 0
        %1360 = vmatprep.mubr.bf16.mxu0 0
        %1361 = vmatmul.mubr.bf16.gmra.mxu0 %v1323
        %v1362 = vpop.f32.mrf.mxu0
        %v1363 = vadd.f32 0.0, %v1362
        %v1364 = vpop.f32.mrf.mxu0
        %v1365 = vpop.f32.mrf.mxu0
        %v1366 = vpop.f32.mrf.mxu0
        %1367 = vdwg.mxu0
        %v1368 = vrcp.pop %v969
        %v1369 = vrcp.pop %v972
        %v1370 = vrcp.pop %v975
        %v1371 = vrcp.pop %v978
        %v1372 = vrcp.pop %v981
        %v1373 = vrcp.pop %v984
        %v1374 = vrcp.pop %v987
        %v1375 = vrcp.pop %v990
        %v1376 = vmul.f32 %v1041, %v1368
        %v1377 = vmul.f32 %v1087, %v1369
        %v1378 = vmul.f32 %v1133, %v1370
        %v1379 = vmul.f32 %v1179, %v1371
        %v1380 = vmul.f32 %v1225, %v1372
        %v1381 = vmul.f32 %v1271, %v1373
        %v1382 = vmul.f32 %v1317, %v1374
        %v1383 = vmul.f32 %v1363, %v1375
        %1385 = vrot.lane.b32.xlu0 %v1377, 16
        %v1386 = vpop.permute.xlu0 %1385
        %1389 = vrot.lane.b32.xlu0 %v1378, 32
        %v1390 = vpop.permute.xlu0 %1389
        %1393 = vrot.lane.b32.xlu0 %v1379, 48
        %v1394 = vpop.permute.xlu0 %1393
        %1397 = vrot.lane.b32.xlu0 %v1380, 64
        %v1398 = vpop.permute.xlu0 %1397
        %1401 = vrot.lane.b32.xlu0 %v1381, 80
        %v1402 = vpop.permute.xlu0 %1401
        %1405 = vrot.lane.b32.xlu0 %v1382, 96
        %v1406 = vpop.permute.xlu0 %1405
        %1409 = vrot.lane.b32.xlu0 %v1383, 112
        %v1410 = vpop.permute.xlu0 %1409
        %v1412 = vsel %vm549, %v1376, %v1386
        %vm1413 = vcmask 261120
        %v1414 = vsel %vm1413, %v1412, %v1390
        %vm1415 = vcmask 392192
        %v1416 = vsel %vm1415, %v1414, %v1394
        %vm1417 = vcmask 523264
        %v1418 = vsel %vm1417, %v1416, %v1398
        %vm1419 = vcmask 654336
        %v1420 = vsel %vm1419, %v1418, %v1402
        %vm1421 = vcmask 785408
        %v1422 = vsel %vm1421, %v1420, %v1406
        %vm1423 = vcmask 916480
        %v1424 = vsel %vm1423, %v1422, %v1410
        %v1425 = vpack.c.bf16 %v1424, %v1424
        %s1426 = smul.u32 %s27, 16
        %s1427 = smul.addr %s1426, 4
        %s1428 = scalar_lea.vmem [#allocation8], %s1427
        %v1429 = vld [vmem:[%s1428] sm:$0xf]
        %v1430 = vld [vmem:[%s1428 + $0x4] sm:$0xf]
        %v1431 = vld [vmem:[%s1428 + $0x8] sm:$0xf]
        %v1432 = vld [vmem:[%s1428 + $0xc] sm:$0xf]
        %v1433 = vld [vmem:[%s1428 + $0x10] sm:$0xf]
        %v1434 = vld [vmem:[%s1428 + $0x14] sm:$0xf]
        %v1435 = vld [vmem:[%s1428 + $0x18] sm:$0xf]
        %v1436 = vld [vmem:[%s1428 + $0x1c] sm:$0xf]
        %v1437 = vld [vmem:[%s1428 + $0x20] sm:$0xf]
        %v1438 = vld [vmem:[%s1428 + $0x24] sm:$0xf]
        %v1439 = vld [vmem:[%s1428 + $0x28] sm:$0xf]
        %v1440 = vld [vmem:[%s1428 + $0x2c] sm:$0xf]
        %v1441 = vld [vmem:[%s1428 + $0x30] sm:$0xf]
        %v1442 = vld [vmem:[%s1428 + $0x34] sm:$0xf]
        %v1443 = vld [vmem:[%s1428 + $0x38] sm:$0xf]
        %v1444 = vld [vmem:[%s1428 + $0x3c] sm:$0xf]
        %v1461 = vunpack.c.l.b16 %v1429
        %v1462 = vunpack.c.l.b16 %v1430
        %v1463 = vunpack.c.l.b16 %v1431
        %v1464 = vunpack.c.l.b16 %v1432
        %v1465 = vunpack.c.l.b16 %v1433
        %v1466 = vunpack.c.l.b16 %v1434
        %v1467 = vunpack.c.l.b16 %v1435
        %v1468 = vunpack.c.l.b16 %v1436
        %v1469 = vunpack.c.l.b16 %v1437
        %v1470 = vunpack.c.l.b16 %v1438
        %v1471 = vunpack.c.l.b16 %v1439
        %v1472 = vunpack.c.l.b16 %v1440
        %v1473 = vunpack.c.l.b16 %v1441
        %v1474 = vunpack.c.l.b16 %v1442
        %v1475 = vunpack.c.l.b16 %v1443
        %v1476 = vunpack.c.l.b16 %v1444
        %v1477 = vpack.c.b16 %v1462, %v1461
        %v1478 = vpack.c.b16 %v1464, %v1463
        %v1479 = vpack.c.b16 %v1466, %v1465
        %v1480 = vpack.c.b16 %v1468, %v1467
        %v1481 = vpack.c.b16 %v1470, %v1469
        %v1482 = vpack.c.b16 %v1472, %v1471
        %v1483 = vpack.c.b16 %v1474, %v1473
        %v1484 = vpack.c.b16 %v1476, %v1475
        %1493 = vmatprep.subr.bf16.mxu0 0
        %1494 = vmatpush1.bf16.msra.mxu0 %v1484
        %1495 = vmatprep.subr.bf16.mxu0 0
        %1496 = vmatpush1.bf16.msra.mxu0 %v1483
        %1497 = vmatprep.subr.bf16.mxu0 0
        %1498 = vmatpush1.bf16.msra.mxu0 %v1482
        %1499 = vmatprep.subr.bf16.mxu0 0
        %1500 = vmatpush1.bf16.msra.mxu0 %v1481
        %1501 = vmatprep.subr.bf16.mxu0 0
        %1502 = vmatpush1.bf16.msra.mxu0 %v1480
        %1503 = vmatprep.subr.bf16.mxu0 0
        %1504 = vmatpush1.bf16.msra.mxu0 %v1479
        %1505 = vmatprep.subr.bf16.mxu0 0
        %1506 = vmatpush1.bf16.msra.mxu0 %v1478
        %1507 = vmatprep.subr.bf16.mxu0 0
        %1508 = vmatpush1.bf16.msra.mxu0 %v1477
        %1509 = vmatprep.subr.bf16.mxu0 0
        %1510 = vmatpush2.bf16.msra.mxu0 0
        %1511 = vmatprep.subr.bf16.mxu0 0
        %1512 = vmatpush2.bf16.msra.mxu0 0
        %1513 = vmatprep.subr.bf16.mxu0 0
        %1514 = vmatpush2.bf16.msra.mxu0 0
        %1515 = vmatprep.subr.bf16.mxu0 0
        %1516 = vmatpush2.bf16.msra.mxu0 0
        %1517 = vmatprep.subr.bf16.mxu0 0
        %1518 = vmatpush2.bf16.msra.mxu0 0
        %1519 = vmatprep.subr.bf16.mxu0 0
        %1520 = vmatpush2.bf16.msra.mxu0 0
        %1521 = vmatprep.subr.bf16.mxu0 0
        %1522 = vmatpush2.bf16.msra.mxu0 0
        %1523 = vmatprep.subr.bf16.mxu0 0
        %1524 = vmatpush2.bf16.msra.mxu0 0
        %1525 = vmatprep.mubr.bf16.mxu0 0
        %1526 = vmatmul.mubr.bf16.gmra.mxu0 %v1425
        %v1527 = vpop.f32.mrf.mxu0
        %v1528 = vadd.f32 0.0, %v1527
        %v1529 = vpop.f32.mrf.mxu0
        %v1530 = vpop.f32.mrf.mxu0
        %v1531 = vpop.f32.mrf.mxu0
        %1532 = vdwg.mxu0
        %p1533 = scmp.eq.s32.totalorder %s27, 0
        // Predicated region
        $region49: #{tpu_custom_call.1} parent=35 // pred_check
          %p1534 = pneg %p1533
        $region50: #{tpu_custom_call.1} parent=35 // pred_check_branch
          %1536 = sbr.rel (%p1534) target = $region52
        $region51: #{tpu_custom_call.1} parent=35 // pred_region
          %1537 = vst [vmem:[#allocation2] sm:$0xff] %v1528
        $region52: #{tpu_custom_call.1} parent=35 // pred_fallthru
          _
        %p1538 = scmp.gt.s32.totalorder %s27, 0
        // Predicated region
        $region53: #{tpu_custom_call.1} parent=35 // pred_check
          %p1539 = pneg %p1538
        $region54: #{tpu_custom_call.1} parent=35 // pred_check_branch
          %1541 = sbr.rel (%p1539) target = $region56
        $region55: #{tpu_custom_call.1} parent=35 // pred_region
          %v1542 = vld [vmem:[#allocation2] sm:$0xff]
          %v1543 = vadd.f32 %v1542, %v1528
          %1544 = vst [vmem:[#allocation2] sm:$0xff] %v1543
        $region56: #{tpu_custom_call.1} parent=35 // pred_fallthru
          _
        // Predicated region
        $region57: #{tpu_custom_call.1} parent=35 // pred_check
          %p1545 = pneg %p1533
        $region58: #{tpu_custom_call.1} parent=35 // pred_check_branch
          %1547 = sbr.rel (%p1545) target = $region60
        $region59: #{tpu_custom_call.1} parent=35 // pred_region
          %v1548 = vld [vmem:[#allocation2] sm:$0xff]
          %v1549 = vld [vmem:[%s3] sm:$0x1]
          %v1551 = vlaneseq
          %v1552 = vshrl.u32 %v1551, 7
          %v1553 = vsub.s32 0, %v1552
          %v1554 = vrot.slane %v1549, %v1553
          %v1556 = vadd.f32 %v1548, %v1554
          %1557 = vst [vmem:[%s253] sm:$0xff] %v1556
        $region60: #{tpu_custom_call.1} parent=35 // pred_fallthru
          _
        %s1558 = sand.u32 %s131, 1
        %s1559 = scalar_lea.sflag [#allocation5], %s1558
        %s1560 = sand.u32 %s131, 1
        %s1561 = smul.addr %s1560, 8
        %s1562 = scalar_lea.vmem [#allocation9], %s1561
        // Predicated region
        $region61: #{tpu_custom_call.1} parent=35 // pred_check
          %p1563 = pneg %p141
        $region62: #{tpu_custom_call.1} parent=35 // pred_check_branch
          %1565 = sbr.rel (%p1563) target = $region64
        $region63: #{tpu_custom_call.1} parent=35 // pred_region
          %s1567 = ssub.s32 128, 128
          %1568 = vsyncadd %s1559, %s1567
          %s1569 = smul.addr %s26, 128
          %s1570 = scalar_lea.hbm %s4, %s1569
          %s1572 = sshll.u32 %s1562, 4
          %s1573 = int_to_ptr.vmem [resolvable:$true] %s1572
          %1575 = dma.vmem_to_hbm [thread:$0]  %s1573, 128, %s1570, %s1559
        $region64: #{tpu_custom_call.1} parent=35 // pred_fallthru
          _
      $region36: #{tpu_custom_call.1} parent=5 // pred_fallthru
        _
      %p1576 = scmp.le.s32.totalorder 2, %s17
      // Predicated region
      $region65: #{tpu_custom_call.1} parent=5 // pred_check
        %p1577 = pneg %p1576
      $region66: #{tpu_custom_call.1} parent=5 // pred_check_branch
        %1579 = sbr.rel (%p1577) target = $region68
      $region67: #{tpu_custom_call.1} parent=5 // pred_region
        %s1580 = ssub.s32 %s17, 2
        // Predicated region
        $region69: #{tpu_custom_call.1} parent=67 // pred_check
          %p1581 = pneg %p147
        $region70: #{tpu_custom_call.1} parent=67 // pred_check_branch
          %1583 = sbr.rel (%p1581) target = $region72
        $region71: #{tpu_custom_call.1} parent=67 // pred_region
          %s1584 = sand.u32 %s132, 1
          %s1585 = scalar_lea.sflag [#allocation5], %s1584
          %s1586 = sand.u32 %s132, 1
          %s1587 = smul.addr %s1586, 8
          %s1588 = scalar_lea.vmem [#allocation9], %s1587
          %1589 = dma.done %s1585, 128
        $region72: #{tpu_custom_call.1} parent=67 // pred_fallthru
          _
      $region68: #{tpu_custom_call.1} parent=5 // pred_fallthru
        _
    $region6: #{tpu_custom_call.1} parent=1 // loop_footer
      %s21 = sadd.s32 1, %s17
    $region7: #{tpu_custom_call.1} parent=1 // loop_footer_branch
      %16 = sbr.rel target = $region3
    $region8: #{tpu_custom_call.1} parent=1 // loop_exit
      _
    %1590 = vsyncpa [#allocation4], 1
    %s1591 = scalar_lea.sflag [#allocation4], 1
    %1592 = vsyncpa %s1591, 1
    %1593 = vsyncpa [#allocation7], 1
    %1594 = vsyncpa [#allocation5], 1
    %s1595 = scalar_lea.sflag [#allocation5], 1
    %1596 = vsyncpa %s1595, 1

</llo_original>
